<compile_context>
chip_gen: v7x
topology: tpu7x:2x2x1
jax: 0.10.0
libtpu: 0.0.40
codegen_flags: <defaults>
</compile_context>

<pallas_src>
import functools

import jax
import jax.numpy as jnp
from jax.experimental import pallas as pl
from jax.experimental.pallas import tpu as pltpu


def _round_up(x, m):
    return ((x + m - 1) // m) * m


def _choose_tile_b(n, max_tile_b=512):
    """Batch tile: multiple of 16, <= max_tile_b, and >= 2 grid steps when possible."""
    n = max(int(n), 1)
    if n <= 16:
        return 16
    half = _round_up((n + 1) // 2, 16)
    return min(max_tile_b, half)


def _mlp_kernel(x_ref,
                wx_ref, b0_ref,
                w1_ref, b1_ref,
                w2_ref, b2_ref,
                w3h_ref, b3_ref,
                w4_ref, b4_ref,
                wo_ref, bo_ref,
                out_ref, *, w_pad, n_sub):
    f32 = jnp.float32
    wx = wx_ref[...]
    w1 = w1_ref[...]
    w2 = w2_ref[...]
    w3h = w3h_ref[...]
    w4 = w4_ref[...]
    wo = wo_ref[...]
    b0 = b0_ref[...]
    b1 = b1_ref[...]
    b2 = b2_ref[...]
    b3 = b3_ref[...]
    b4 = b4_ref[...]
    bo = bo_ref[...]
    cdt = wx.dtype  # compute dtype (bf16 or f32); accumulation is always f32

    def chain(x):
        # Fused short-K matmul: x @ [w0 | w3x] -> (rows, 2*w_pad) in f32.
        xw = jnp.dot(x, wx, preferred_element_type=f32)
        # layer 0: Linear(input_dim, W) + relu
        h = jnp.maximum(xw[:, :w_pad] + b0, 0.0).astype(cdt)
        # skip projection of the raw input (consumed by layer 3); cast now to
        # halve the buffer that stays live across the next three matmuls.
        skip = xw[:, w_pad:].astype(cdt)
        # layer 1: Linear(W, W) + relu
        h = jnp.maximum(
            jnp.dot(h, w1, preferred_element_type=f32) + b1, 0.0).astype(cdt)
        # layer 2: Linear(W, W) + relu
        h = jnp.maximum(
            jnp.dot(h, w2, preferred_element_type=f32) + b2, 0.0).astype(cdt)
        # layer 3: cat([input, h]) @ W3t == skip + h @ W3t[input_dim:]
        h = jnp.maximum(
            skip + jnp.dot(h, w3h, preferred_element_type=f32) + b3, 0.0).astype(cdt)
        # layer 4: Linear(W, W) + relu
        h = jnp.maximum(
            jnp.dot(h, w4, preferred_element_type=f32) + b4, 0.0).astype(cdt)
        # output head: Linear(W, output_dim_padded), lane-dense 128-wide store
        return (jnp.dot(h, wo, preferred_element_type=f32) + bo).astype(out_ref.dtype)

    rows = out_ref.shape[0]
    sub = rows // n_sub
    # n_sub == 2: two independent dependency chains per grid step so the
    # scheduler can overlap one sub-tile's VPU epilogue with the other's MXU work.
    for s in range(n_sub):
        out_ref[pl.ds(s * sub, sub), :] = chain(x_ref[pl.ds(s * sub, sub), :])


def init_params(key, input_dim, output_dim, W=200, D=5, skips=(2,)):
    """Deterministic init (uniform, PyTorch-Linear-like fan_in scaling).

    Returns weights pre-transposed to (in_features, out_features) and biases
    with shape (1, out_features). All float32.
    """
    dims_in = [input_dim]
    for i in range(D - 1):
        dims_in.append(W + input_dim if i in skips else W)
    dims_in.append(W)                      # output head input
    dims_out = [W] * D + [output_dim]

    params = []
    for din, dout in zip(dims_in, dims_out):
        key, kw, kb = jax.random.split(key, 3)
        bound = 1.0 / (din ** 0.5)
        w = jax.random.uniform(kw, (din, dout), jnp.float32, -bound, bound)
        b = jax.random.uniform(kb, (1, dout), jnp.float32, -bound, bound)
        params.append((w, b))
    return params


@functools.partial(jax.jit, static_argnames=("tile_b", "compute_dtype"))
def neural_network_forward(network_input, params, *, tile_b=None,
                           compute_dtype=jnp.bfloat16):
    """Pallas forward pass for the D=5, skips=[2] network. x: (N, input_dim) f32."""
    N, input_dim = network_input.shape
    (w0, b0), (w1, b1), (w2, b2), (w3, b3), (w4, b4), (wo, bo) = params
    W = w0.shape[1]
    out_dim = wo.shape[1]

    if tile_b is None:
        tile_b = _choose_tile_b(N)
    tile_b = _round_up(int(tile_b), 8)
    n_sub = 2 if (tile_b >= 256 and tile_b % 16 == 0) else 1

    # ---- Padded, lane-dense layout ------------------------------------------
    W_pad = _round_up(W, 128)                      # 200 -> 256
    OUT_PAD = _round_up(max(out_dim, 1), 128)      # 4  -> 128
    N_pad = _round_up(N, tile_b)

    def pad2(a, rows, cols):
        return jnp.pad(a, ((0, rows - a.shape[0]), (0, cols - a.shape[1])))

    # Split the skip layer's weight: rows [0:input_dim] pair with the raw
    # network input (cat([input, h]) order), rows [input_dim:] pair with h.
    w3x = w3[:input_dim, :]
    w3h = w3[input_dim:, :]

    # Fuse the two K=input_dim matmuls: x @ [w0 | w3x].
    wx = jnp.concatenate([pad2(w0, input_dim, W_pad),
                          pad2(w3x, input_dim, W_pad)], axis=1)

    w1p = pad2(w1, W_pad, W_pad)
    w2p = pad2(w2, W_pad, W_pad)
    w3hp = pad2(w3h, W_pad, W_pad)
    w4p = pad2(w4, W_pad, W_pad)
    wop = pad2(wo, W_pad, OUT_PAD)

    b0p = pad2(b0, 1, W_pad)
    b1p = pad2(b1, 1, W_pad)
    b2p = pad2(b2, 1, W_pad)
    b3p = pad2(b3, 1, W_pad)
    b4p = pad2(b4, 1, W_pad)
    bop = pad2(bo, 1, OUT_PAD)

    # bf16 (or f32) weights/activations; biases stay f32 (added post-accum).
    wx, w1p, w2p, w3hp, w4p, wop = (a.astype(compute_dtype)
                                    for a in (wx, w1p, w2p, w3hp, w4p, wop))
    x_in = network_input.astype(compute_dtype)
    if N_pad != N:
        x_in = jnp.pad(x_in, ((0, N_pad - N), (0, 0)))

    # ---- pallas_call ---------------------------------------------------------
    # Grid-invariant operands: same block every step -> Pallas elides the
    # per-step re-DMA (weights land in VMEM once).
    def full(shape):
        return pl.BlockSpec(shape, lambda i: (0,) * len(shape))

    grid = (pl.cdiv(N_pad, tile_b),)
    in_specs = [
        pl.BlockSpec((tile_b, input_dim), lambda i: (i, 0)),   # x (K kept at 16)
        full(wx.shape), full(b0p.shape),
        full(w1p.shape), full(b1p.shape),
        full(w2p.shape), full(b2p.shape),
        full(w3hp.shape), full(b3p.shape),
        full(w4p.shape), full(b4p.shape),
        full(wop.shape), full(bop.shape),
    ]
    out_specs = pl.BlockSpec((tile_b, OUT_PAD), lambda i: (i, 0))

    out_padded = pl.pallas_call(
        functools.partial(_mlp_kernel, w_pad=W_pad, n_sub=n_sub),
        out_shape=jax.ShapeDtypeStruct((N_pad, OUT_PAD), compute_dtype),
        grid=grid,
        in_specs=in_specs,
        out_specs=out_specs,
        compiler_params=pltpu.CompilerParams(
            dimension_semantics=("parallel",),
            vmem_limit_bytes=32 * 1024 * 1024),
    )(x_in, wx, b0p, w1p, b1p, w2p, b2p, w3hp, b3p, w4p, b4p, wop, bop)

    return out_padded[:N, :out_dim].astype(jnp.float32)


def reference_forward(network_input, params, skips=(2,)):
    """Pure-JAX reference mirroring the PyTorch forward exactly (f32)."""
    x = network_input
    linears = params[:-1]
    wo, bo = params[-1]
    for i, (w, b) in enumerate(linears):
        x = jax.nn.relu(jnp.dot(x, w, precision="highest") + b)
        if i in skips:
            x = jnp.concatenate([network_input, x], axis=-1)
    return jnp.dot(x, wo, precision="highest") + bo


if __name__ == "__main__":
    # Shapes consistent with the module: input_dim=16, output_dim=4, W=200,
    # depth D=5, skips=[2].
    INPUT_DIM, OUTPUT_DIM, W = 16, 4, 200

    key = jax.random.PRNGKey(0)
    k_x, k_p = jax.random.split(key)
    params = init_params(k_p, INPUT_DIM, OUTPUT_DIM, W=W)

    # ---- Small batch: tile_b=128, grid=(2,), single sub-tile -----------------
    x_small = jax.random.normal(k_x, (256, INPUT_DIM), jnp.float32)
    ref_small = reference_forward(x_small, params)

    # f32 compute path: tight check against the reference.
    out_f32 = jax.block_until_ready(
        neural_network_forward(x_small, params, compute_dtype=jnp.float32))
    assert out_f32.shape == (256, OUTPUT_DIM)
    assert jnp.allclose(out_f32, ref_small, atol=2e-3, rtol=2e-3), (
        f"f32 max abs err {jnp.max(jnp.abs(out_f32 - ref_small))}")

    # bf16 compute path (default, MXU-friendly): looser tolerance.
    out_bf16 = jax.block_until_ready(neural_network_forward(x_small, params))
    assert out_bf16.shape == (256, OUTPUT_DIM)
    assert jnp.allclose(out_bf16, ref_small, atol=8e-2, rtol=8e-2), (
        f"bf16 max abs err {jnp.max(jnp.abs(out_bf16 - ref_small))}")

    # ---- Ragged batch: tile_b=512, grid=(2,), padding 1000->1024, 2 sub-tiles -
    x_big = jax.random.normal(k_x, (1000, INPUT_DIM), jnp.float32)
    ref_big = reference_forward(x_big, params)
    out_big = jax.block_until_ready(neural_network_forward(x_big, params))
    assert out_big.shape == (1000, OUTPUT_DIM)
    assert jnp.allclose(out_big, ref_big, atol=8e-2, rtol=8e-2), (
        f"bf16 (big) max abs err {jnp.max(jnp.abs(out_big - ref_big))}")

    print("KERNEL_OK")
</pallas_src>

<mosaic_0001>
module attributes {stable_mosaic.version = 11 : i64} {
  func.func @_mlp_kernel(%arg0: i32, %arg1: memref<128x16xf32, #tpu.memory_space<vmem>>, %arg2: memref<16x512xf32, #tpu.memory_space<vmem>>, %arg3: memref<1x256xf32, #tpu.memory_space<vmem>>, %arg4: memref<256x256xf32, #tpu.memory_space<vmem>>, %arg5: memref<1x256xf32, #tpu.memory_space<vmem>>, %arg6: memref<256x256xf32, #tpu.memory_space<vmem>>, %arg7: memref<1x256xf32, #tpu.memory_space<vmem>>, %arg8: memref<256x256xf32, #tpu.memory_space<vmem>>, %arg9: memref<1x256xf32, #tpu.memory_space<vmem>>, %arg10: memref<256x256xf32, #tpu.memory_space<vmem>>, %arg11: memref<1x256xf32, #tpu.memory_space<vmem>>, %arg12: memref<256x128xf32, #tpu.memory_space<vmem>>, %arg13: memref<1x128xf32, #tpu.memory_space<vmem>>, %arg14: memref<128x128xf32, #tpu.memory_space<vmem>>) attributes {dimension_semantics = [#tpu.dimension_semantics<parallel>], iteration_bounds = array<i64: 2>, scalar_prefetch = 0 : i64, scratch_operands = 0 : i64, tpu.core_type = #tpu.core_type<tc>, window_params = [{transform_indices = @transform_0, window_bounds = array<i64: 128, 16>}, {pipeline_mode = #tpu.pipeline_mode<synchronous>, transform_indices = @transform_1, window_bounds = array<i64: 16, 512>}, {pipeline_mode = #tpu.pipeline_mode<synchronous>, transform_indices = @transform_2, window_bounds = array<i64: 1, 256>}, {pipeline_mode = #tpu.pipeline_mode<synchronous>, transform_indices = @transform_3, window_bounds = array<i64: 256, 256>}, {pipeline_mode = #tpu.pipeline_mode<synchronous>, transform_indices = @transform_4, window_bounds = array<i64: 1, 256>}, {pipeline_mode = #tpu.pipeline_mode<synchronous>, transform_indices = @transform_5, window_bounds = array<i64: 256, 256>}, {pipeline_mode = #tpu.pipeline_mode<synchronous>, transform_indices = @transform_6, window_bounds = array<i64: 1, 256>}, {pipeline_mode = #tpu.pipeline_mode<synchronous>, transform_indices = @transform_7, window_bounds = array<i64: 256, 256>}, {pipeline_mode = #tpu.pipeline_mode<synchronous>, transform_indices = @transform_8, window_bounds = array<i64: 1, 256>}, {pipeline_mode = #tpu.pipeline_mode<synchronous>, transform_indices = @transform_9, window_bounds = array<i64: 256, 256>}, {pipeline_mode = #tpu.pipeline_mode<synchronous>, transform_indices = @transform_10, window_bounds = array<i64: 1, 256>}, {pipeline_mode = #tpu.pipeline_mode<synchronous>, transform_indices = @transform_11, window_bounds = array<i64: 256, 128>}, {pipeline_mode = #tpu.pipeline_mode<synchronous>, transform_indices = @transform_12, window_bounds = array<i64: 1, 128>}, {transform_indices = @transform_13, window_bounds = array<i64: 128, 128>}]} {
    %c0 = arith.constant 0 : index
    %c0_0 = arith.constant 0 : index
    %0 = vector.load %arg2[%c0, %c0_0] : memref<16x512xf32, #tpu.memory_space<vmem>>, vector<16x512xf32>
    %c0_1 = arith.constant 0 : index
    %c0_2 = arith.constant 0 : index
    %1 = vector.load %arg4[%c0_1, %c0_2] : memref<256x256xf32, #tpu.memory_space<vmem>>, vector<256x256xf32>
    %c0_3 = arith.constant 0 : index
    %c0_4 = arith.constant 0 : index
    %2 = vector.load %arg6[%c0_3, %c0_4] : memref<256x256xf32, #tpu.memory_space<vmem>>, vector<256x256xf32>
    %c0_5 = arith.constant 0 : index
    %c0_6 = arith.constant 0 : index
    %3 = vector.load %arg8[%c0_5, %c0_6] : memref<256x256xf32, #tpu.memory_space<vmem>>, vector<256x256xf32>
    %c0_7 = arith.constant 0 : index
    %c0_8 = arith.constant 0 : index
    %4 = vector.load %arg10[%c0_7, %c0_8] : memref<256x256xf32, #tpu.memory_space<vmem>>, vector<256x256xf32>
    %c0_9 = arith.constant 0 : index
    %c0_10 = arith.constant 0 : index
    %5 = vector.load %arg12[%c0_9, %c0_10] : memref<256x128xf32, #tpu.memory_space<vmem>>, vector<256x128xf32>
    %c0_11 = arith.constant 0 : index
    %c0_12 = arith.constant 0 : index
    %6 = vector.load %arg3[%c0_11, %c0_12] : memref<1x256xf32, #tpu.memory_space<vmem>>, vector<1x256xf32>
    %c0_13 = arith.constant 0 : index
    %c0_14 = arith.constant 0 : index
    %7 = vector.load %arg5[%c0_13, %c0_14] : memref<1x256xf32, #tpu.memory_space<vmem>>, vector<1x256xf32>
    %c0_15 = arith.constant 0 : index
    %c0_16 = arith.constant 0 : index
    %8 = vector.load %arg7[%c0_15, %c0_16] : memref<1x256xf32, #tpu.memory_space<vmem>>, vector<1x256xf32>
    %c0_17 = arith.constant 0 : index
    %c0_18 = arith.constant 0 : index
    %9 = vector.load %arg9[%c0_17, %c0_18] : memref<1x256xf32, #tpu.memory_space<vmem>>, vector<1x256xf32>
    %c0_19 = arith.constant 0 : index
    %c0_20 = arith.constant 0 : index
    %10 = vector.load %arg11[%c0_19, %c0_20] : memref<1x256xf32, #tpu.memory_space<vmem>>, vector<1x256xf32>
    %c0_21 = arith.constant 0 : index
    %c0_22 = arith.constant 0 : index
    %11 = vector.load %arg13[%c0_21, %c0_22] : memref<1x128xf32, #tpu.memory_space<vmem>>, vector<1x128xf32>
    %c0_23 = arith.constant 0 : index
    %c0_24 = arith.constant 0 : index
    %12 = vector.load %arg1[%c0_23, %c0_24] : memref<128x16xf32, #tpu.memory_space<vmem>>, vector<128x16xf32>
    %cst = arith.constant dense<0.000000e+00> : vector<128x512xf32>
    %13 = tpu.matmul %12, %0, %cst {dimension_numbers = #tpu.dot_dimension_numbers<[1], [0], [0], [1], [0, 0, 1, 1], [], []>} : vector<128x16xf32>, vector<16x512xf32>, vector<128x512xf32> -> vector<128x512xf32>
    %14 = vector.extract_strided_slice %13 {offsets = [0, 0], sizes = [128, 256], strides = [1, 1]} : vector<128x512xf32> to vector<128x256xf32>
    %15 = vector.broadcast %6 : vector<1x256xf32> to vector<128x256xf32>
    %16 = arith.addf %14, %15 : vector<128x256xf32>
    %cst_25 = arith.constant 0.000000e+00 : f32
    %17 = vector.broadcast %cst_25 : f32 to vector<128x256xf32>
    %18 = arith.maximumf %16, %17 : vector<128x256xf32>
    %19 = vector.extract_strided_slice %13 {offsets = [0, 256], sizes = [128, 256], strides = [1, 1]} : vector<128x512xf32> to vector<128x256xf32>
    %cst_26 = arith.constant dense<0.000000e+00> : vector<128x256xf32>
    %20 = tpu.matmul %18, %1, %cst_26 {dimension_numbers = #tpu.dot_dimension_numbers<[1], [0], [0], [1], [0, 0, 1, 1], [], []>} : vector<128x256xf32>, vector<256x256xf32>, vector<128x256xf32> -> vector<128x256xf32>
    %21 = vector.broadcast %7 : vector<1x256xf32> to vector<128x256xf32>
    %22 = arith.addf %20, %21 : vector<128x256xf32>
    %cst_27 = arith.constant 0.000000e+00 : f32
    %23 = vector.broadcast %cst_27 : f32 to vector<128x256xf32>
    %24 = arith.maximumf %22, %23 : vector<128x256xf32>
    %cst_28 = arith.constant dense<0.000000e+00> : vector<128x256xf32>
    %25 = tpu.matmul %24, %2, %cst_28 {dimension_numbers = #tpu.dot_dimension_numbers<[1], [0], [0], [1], [0, 0, 1, 1], [], []>} : vector<128x256xf32>, vector<256x256xf32>, vector<128x256xf32> -> vector<128x256xf32>
    %26 = vector.broadcast %8 : vector<1x256xf32> to vector<128x256xf32>
    %27 = arith.addf %25, %26 : vector<128x256xf32>
    %cst_29 = arith.constant 0.000000e+00 : f32
    %28 = vector.broadcast %cst_29 : f32 to vector<128x256xf32>
    %29 = arith.maximumf %27, %28 : vector<128x256xf32>
    %cst_30 = arith.constant dense<0.000000e+00> : vector<128x256xf32>
    %30 = tpu.matmul %29, %3, %cst_30 {dimension_numbers = #tpu.dot_dimension_numbers<[1], [0], [0], [1], [0, 0, 1, 1], [], []>} : vector<128x256xf32>, vector<256x256xf32>, vector<128x256xf32> -> vector<128x256xf32>
    %31 = arith.addf %19, %30 : vector<128x256xf32>
    %32 = vector.broadcast %9 : vector<1x256xf32> to vector<128x256xf32>
    %33 = arith.addf %31, %32 : vector<128x256xf32>
    %cst_31 = arith.constant 0.000000e+00 : f32
    %34 = vector.broadcast %cst_31 : f32 to vector<128x256xf32>
    %35 = arith.maximumf %33, %34 : vector<128x256xf32>
    %cst_32 = arith.constant dense<0.000000e+00> : vector<128x256xf32>
    %36 = tpu.matmul %35, %4, %cst_32 {dimension_numbers = #tpu.dot_dimension_numbers<[1], [0], [0], [1], [0, 0, 1, 1], [], []>} : vector<128x256xf32>, vector<256x256xf32>, vector<128x256xf32> -> vector<128x256xf32>
    %37 = vector.broadcast %10 : vector<1x256xf32> to vector<128x256xf32>
    %38 = arith.addf %36, %37 : vector<128x256xf32>
    %cst_33 = arith.constant 0.000000e+00 : f32
    %39 = vector.broadcast %cst_33 : f32 to vector<128x256xf32>
    %40 = arith.maximumf %38, %39 : vector<128x256xf32>
    %cst_34 = arith.constant dense<0.000000e+00> : vector<128x128xf32>
    %41 = tpu.matmul %40, %5, %cst_34 {dimension_numbers = #tpu.dot_dimension_numbers<[1], [0], [0], [1], [0, 0, 1, 1], [], []>} : vector<128x256xf32>, vector<256x128xf32>, vector<128x128xf32> -> vector<128x128xf32>
    %42 = vector.broadcast %11 : vector<1x128xf32> to vector<128x128xf32>
    %43 = arith.addf %41, %42 : vector<128x128xf32>
    %c0_35 = arith.constant 0 : index
    %c0_36 = arith.constant 0 : index
    %44 = vector.load %arg14[%c0_35, %c0_36] : memref<128x128xf32, #tpu.memory_space<vmem>>, vector<128x128xf32>
    tpu.vector_store %arg14[%c0_35, %c0_36], %43 {strides = array<i32>} : memref<128x128xf32, #tpu.memory_space<vmem>>, vector<128x128xf32>,
    return
  }
  func.func @transform_0(%arg0: i32) -> (i32, i32) {
    %c0_i32 = arith.constant 0 : i32
    %c0_i32_0 = arith.constant 0 : i32
    return %arg0, %c0_i32 : i32, i32
  }
  func.func @transform_1(%arg0: i32) -> (i32, i32) {
    %c0_i32 = arith.constant 0 : i32
    %c0_i32_0 = arith.constant 0 : i32
    %c0_i32_1 = arith.constant 0 : i32
    return %c0_i32, %c0_i32_0 : i32, i32
  }
  func.func @transform_2(%arg0: i32) -> (i32, i32) {
    %c0_i32 = arith.constant 0 : i32
    %c0_i32_0 = arith.constant 0 : i32
    %c0_i32_1 = arith.constant 0 : i32
    return %c0_i32, %c0_i32_0 : i32, i32
  }
  func.func @transform_3(%arg0: i32) -> (i32, i32) {
    %c0_i32 = arith.constant 0 : i32
    %c0_i32_0 = arith.constant 0 : i32
    %c0_i32_1 = arith.constant 0 : i32
    return %c0_i32, %c0_i32_0 : i32, i32
  }
  func.func @transform_4(%arg0: i32) -> (i32, i32) {
    %c0_i32 = arith.constant 0 : i32
    %c0_i32_0 = arith.constant 0 : i32
    %c0_i32_1 = arith.constant 0 : i32
    return %c0_i32, %c0_i32_0 : i32, i32
  }
  func.func @transform_5(%arg0: i32) -> (i32, i32) {
    %c0_i32 = arith.constant 0 : i32
    %c0_i32_0 = arith.constant 0 : i32
    %c0_i32_1 = arith.constant 0 : i32
    return %c0_i32, %c0_i32_0 : i32, i32
  }
  func.func @transform_6(%arg0: i32) -> (i32, i32) {
    %c0_i32 = arith.constant 0 : i32
    %c0_i32_0 = arith.constant 0 : i32
    %c0_i32_1 = arith.constant 0 : i32
    return %c0_i32, %c0_i32_0 : i32, i32
  }
  func.func @transform_7(%arg0: i32) -> (i32, i32) {
    %c0_i32 = arith.constant 0 : i32
    %c0_i32_0 = arith.constant 0 : i32
    %c0_i32_1 = arith.constant 0 : i32
    return %c0_i32, %c0_i32_0 : i32, i32
  }
  func.func @transform_8(%arg0: i32) -> (i32, i32) {
    %c0_i32 = arith.constant 0 : i32
    %c0_i32_0 = arith.constant 0 : i32
    %c0_i32_1 = arith.constant 0 : i32
    return %c0_i32, %c0_i32_0 : i32, i32
  }
  func.func @transform_9(%arg0: i32) -> (i32, i32) {
    %c0_i32 = arith.constant 0 : i32
    %c0_i32_0 = arith.constant 0 : i32
    %c0_i32_1 = arith.constant 0 : i32
    return %c0_i32, %c0_i32_0 : i32, i32
  }
  func.func @transform_10(%arg0: i32) -> (i32, i32) {
    %c0_i32 = arith.constant 0 : i32
    %c0_i32_0 = arith.constant 0 : i32
    %c0_i32_1 = arith.constant 0 : i32
    return %c0_i32, %c0_i32_0 : i32, i32
  }
  func.func @transform_11(%arg0: i32) -> (i32, i32) {
    %c0_i32 = arith.constant 0 : i32
    %c0_i32_0 = arith.constant 0 : i32
    %c0_i32_1 = arith.constant 0 : i32
    return %c0_i32, %c0_i32_0 : i32, i32
  }
  func.func @transform_12(%arg0: i32) -> (i32, i32) {
    %c0_i32 = arith.constant 0 : i32
    %c0_i32_0 = arith.constant 0 : i32
    %c0_i32_1 = arith.constant 0 : i32
    return %c0_i32, %c0_i32_0 : i32, i32
  }
  func.func @transform_13(%arg0: i32) -> (i32, i32) {
    %c0_i32 = arith.constant 0 : i32
    %c0_i32_0 = arith.constant 0 : i32
    return %arg0, %c0_i32 : i32, i32
  }
}

</mosaic_0001>

<llo_original>
// kernel: neural_network_forward.1
$region0: #{neural_network_forward.1}
  #allocation0 [shape = 'u32[]', space=smem, size = 0x4, offset = 0x4, fixed_abs, tag = 'smem constant byte address 0x4 - core index']
  #allocation1 [shape = 'u32[144,128]{1,0:T(1,128)}', space=vmem, size = 0x12000, scoped, tag = 'internal scratch']
  %s0 = inlined_call_operand.vmem [shape: f32[256,16], index: 0, kind: input, shape index: {}]
  %s1 = inlined_call_operand.vmem [shape: f32[16,512], index: 1, kind: input, shape index: {}]
  %s2 = inlined_call_operand.vmem [shape: f32[1,256], index: 2, kind: input, shape index: {}]
  %s3 = inlined_call_operand.vmem [shape: f32[256,256], index: 3, kind: input, shape index: {}]
  %s4 = inlined_call_operand.vmem [shape: f32[1,256], index: 4, kind: input, shape index: {}]
  %s5 = inlined_call_operand.vmem [shape: f32[256,256], index: 5, kind: input, shape index: {}]
  %s6 = inlined_call_operand.vmem [shape: f32[1,256], index: 6, kind: input, shape index: {}]
  %s7 = inlined_call_operand.vmem [shape: f32[256,256], index: 7, kind: input, shape index: {}]
  %s8 = inlined_call_operand.vmem [shape: f32[1,256], index: 8, kind: input, shape index: {}]
  %s9 = inlined_call_operand.vmem [shape: f32[256,256], index: 9, kind: input, shape index: {}]
  %s10 = inlined_call_operand.vmem [shape: f32[1,256], index: 10, kind: input, shape index: {}]
  %s11 = inlined_call_operand.vmem [shape: f32[256,128], index: 11, kind: input, shape index: {}]
  %s12 = inlined_call_operand.vmem [shape: f32[1,128], index: 12, kind: input, shape index: {}]
  %s13 = inlined_call_operand.vmem [shape: f32[256,128], index: 13, kind: output, shape index: {}]
  %s14 = sld [smem:[#allocation0]]
  $region85: #{neural_network_forward.1} parent=0
    _
  %s16 = ssub.s32 1, %s14
  %s17 = scalar_select 0, %s16, %s14
  loop: start=0, step=1, limit=4
  $region2: #{neural_network_forward.1} parent=0 // loop_pre_header
    _
  $region3: #{neural_network_forward.1} parent=0 // loop_header
    %s19 = sphi 0, %s23
    %p20 = scmp.ge.s32.totalorder %s19, 4
    %s29 = sphi 0, %s31
    %s32 = sphi 0, %s29
    %s33 = sphi 0, %s32
    %s49 = sphi 0, %s33
    %s53 = sphi 0, %s53
    %s55 = sphi 0, %s53
    %s56 = sphi 0, %s55
    %s70 = sphi 0, %s56
    %s74 = sphi 0, %s74
    %s76 = sphi 0, %s74
    %s77 = sphi 0, %s76
    %s91 = sphi 0, %s77
    %s95 = sphi 0, %s95
    %s97 = sphi 0, %s95
    %s98 = sphi 0, %s97
    %s112 = sphi 0, %s98
    %s116 = sphi 0, %s116
    %s118 = sphi 0, %s116
    %s119 = sphi 0, %s118
    %s133 = sphi 0, %s119
    %s137 = sphi 0, %s137
    %s139 = sphi 0, %s137
    %s140 = sphi 0, %s139
    %s154 = sphi 0, %s140
    %s158 = sphi 0, %s158
    %s160 = sphi 0, %s158
    %s161 = sphi 0, %s160
    %s175 = sphi 0, %s161
    %s179 = sphi 0, %s179
    %s181 = sphi 0, %s179
    %s182 = sphi 0, %s181
    %s196 = sphi 0, %s182
    %s200 = sphi 0, %s200
    %s202 = sphi 0, %s200
    %s203 = sphi 0, %s202
    %s217 = sphi 0, %s203
    %s221 = sphi 0, %s221
    %s223 = sphi 0, %s221
    %s224 = sphi 0, %s223
    %s238 = sphi 0, %s224
    %s242 = sphi 0, %s242
    %s244 = sphi 0, %s242
    %s245 = sphi 0, %s244
    %s259 = sphi 0, %s245
    %s263 = sphi 0, %s263
    %s265 = sphi 0, %s263
    %s266 = sphi 0, %s265
    %s280 = sphi 0, %s266
    %s284 = sphi 0, %s284
    %s286 = sphi 0, %s284
    %s287 = sphi 0, %s286
    %s301 = sphi 0, %s287
    %s307 = sphi 0, %s309
    %s310 = sphi 0, %s307
    %s311 = sphi 0, %s310
    %s327 = sphi 0, %s311
  $region4: #{neural_network_forward.1} parent=0 // loop_header_branch
    %22 = sbr.rel (%p20) target = $region8
  $region5: #{neural_network_forward.1} parent=0 // loop_body
    %s24 = ssub.s32 %s19, 1
    %s25 = ssub.s32 %s19, 2
    %s26 = sadd.s32 %s19, 1
    %s27 = ssub.s32 %s19, %s26
    %p28 = scmp.eq.s32.totalorder %s27, 0
    %s30 = sadd.s32 %s29, 1
    %s31 = scalar_select %p28, %s29, %s30
    %p34 = pneg %p28
    %p35 = scmp.eq.s32.totalorder %s19, 1
    %p36 = por %p34, %p35
    %p37 = scmp.ne.s32.totalorder %s29, %s32
    %p38 = scmp.eq.s32.totalorder %s19, 0
    %p39 = por %p37, %p38
    %p40 = scmp.ne.s32.totalorder %s29, %s32
    %p41 = scmp.eq.s32.totalorder %s24, 1
    %p42 = por %p40, %p41
    %p43 = scmp.ne.s32.totalorder %s32, %s33
    %p44 = scmp.eq.s32.totalorder %s24, 0
    %p45 = por %p43, %p44
    %p46 = scmp.ne.s32.totalorder %s32, %s33
    %p47 = scmp.eq.s32.totalorder %s25, 1
    %p48 = por %p46, %p47
    %p50 = scmp.ne.s32.totalorder %s33, %s49
    %p51 = scmp.eq.s32.totalorder %s25, 0
    %p52 = por %p50, %p51
    %s54 = sadd.s32 %s53, 1
    %p57 = scmp.eq.s32.totalorder %s19, 1
    %p58 = scmp.ne.s32.totalorder %s53, %s55
    %p59 = scmp.eq.s32.totalorder %s19, 0
    %p60 = por %p58, %p59
    %p61 = scmp.ne.s32.totalorder %s53, %s55
    %p62 = scmp.eq.s32.totalorder %s24, 1
    %p63 = por %p61, %p62
    %p64 = scmp.ne.s32.totalorder %s55, %s56
    %p65 = scmp.eq.s32.totalorder %s24, 0
    %p66 = por %p64, %p65
    %p67 = scmp.ne.s32.totalorder %s55, %s56
    %p68 = scmp.eq.s32.totalorder %s25, 1
    %p69 = por %p67, %p68
    %p71 = scmp.ne.s32.totalorder %s56, %s70
    %p72 = scmp.eq.s32.totalorder %s25, 0
    %p73 = por %p71, %p72
    %s75 = sadd.s32 %s74, 1
    %p78 = scmp.eq.s32.totalorder %s19, 1
    %p79 = scmp.ne.s32.totalorder %s74, %s76
    %p80 = scmp.eq.s32.totalorder %s19, 0
    %p81 = por %p79, %p80
    %p82 = scmp.ne.s32.totalorder %s74, %s76
    %p83 = scmp.eq.s32.totalorder %s24, 1
    %p84 = por %p82, %p83
    %p85 = scmp.ne.s32.totalorder %s76, %s77
    %p86 = scmp.eq.s32.totalorder %s24, 0
    %p87 = por %p85, %p86
    %p88 = scmp.ne.s32.totalorder %s76, %s77
    %p89 = scmp.eq.s32.totalorder %s25, 1
    %p90 = por %p88, %p89
    %p92 = scmp.ne.s32.totalorder %s77, %s91
    %p93 = scmp.eq.s32.totalorder %s25, 0
    %p94 = por %p92, %p93
    %s96 = sadd.s32 %s95, 1
    %p99 = scmp.eq.s32.totalorder %s19, 1
    %p100 = scmp.ne.s32.totalorder %s95, %s97
    %p101 = scmp.eq.s32.totalorder %s19, 0
    %p102 = por %p100, %p101
    %p103 = scmp.ne.s32.totalorder %s95, %s97
    %p104 = scmp.eq.s32.totalorder %s24, 1
    %p105 = por %p103, %p104
    %p106 = scmp.ne.s32.totalorder %s97, %s98
    %p107 = scmp.eq.s32.totalorder %s24, 0
    %p108 = por %p106, %p107
    %p109 = scmp.ne.s32.totalorder %s97, %s98
    %p110 = scmp.eq.s32.totalorder %s25, 1
    %p111 = por %p109, %p110
    %p113 = scmp.ne.s32.totalorder %s98, %s112
    %p114 = scmp.eq.s32.totalorder %s25, 0
    %p115 = por %p113, %p114
    %s117 = sadd.s32 %s116, 1
    %p120 = scmp.eq.s32.totalorder %s19, 1
    %p121 = scmp.ne.s32.totalorder %s116, %s118
    %p122 = scmp.eq.s32.totalorder %s19, 0
    %p123 = por %p121, %p122
    %p124 = scmp.ne.s32.totalorder %s116, %s118
    %p125 = scmp.eq.s32.totalorder %s24, 1
    %p126 = por %p124, %p125
    %p127 = scmp.ne.s32.totalorder %s118, %s119
    %p128 = scmp.eq.s32.totalorder %s24, 0
    %p129 = por %p127, %p128
    %p130 = scmp.ne.s32.totalorder %s118, %s119
    %p131 = scmp.eq.s32.totalorder %s25, 1
    %p132 = por %p130, %p131
    %p134 = scmp.ne.s32.totalorder %s119, %s133
    %p135 = scmp.eq.s32.totalorder %s25, 0
    %p136 = por %p134, %p135
    %s138 = sadd.s32 %s137, 1
    %p141 = scmp.eq.s32.totalorder %s19, 1
    %p142 = scmp.ne.s32.totalorder %s137, %s139
    %p143 = scmp.eq.s32.totalorder %s19, 0
    %p144 = por %p142, %p143
    %p145 = scmp.ne.s32.totalorder %s137, %s139
    %p146 = scmp.eq.s32.totalorder %s24, 1
    %p147 = por %p145, %p146
    %p148 = scmp.ne.s32.totalorder %s139, %s140
    %p149 = scmp.eq.s32.totalorder %s24, 0
    %p150 = por %p148, %p149
    %p151 = scmp.ne.s32.totalorder %s139, %s140
    %p152 = scmp.eq.s32.totalorder %s25, 1
    %p153 = por %p151, %p152
    %p155 = scmp.ne.s32.totalorder %s140, %s154
    %p156 = scmp.eq.s32.totalorder %s25, 0
    %p157 = por %p155, %p156
    %s159 = sadd.s32 %s158, 1
    %p162 = scmp.eq.s32.totalorder %s19, 1
    %p163 = scmp.ne.s32.totalorder %s158, %s160
    %p164 = scmp.eq.s32.totalorder %s19, 0
    %p165 = por %p163, %p164
    %p166 = scmp.ne.s32.totalorder %s158, %s160
    %p167 = scmp.eq.s32.totalorder %s24, 1
    %p168 = por %p166, %p167
    %p169 = scmp.ne.s32.totalorder %s160, %s161
    %p170 = scmp.eq.s32.totalorder %s24, 0
    %p171 = por %p169, %p170
    %p172 = scmp.ne.s32.totalorder %s160, %s161
    %p173 = scmp.eq.s32.totalorder %s25, 1
    %p174 = por %p172, %p173
    %p176 = scmp.ne.s32.totalorder %s161, %s175
    %p177 = scmp.eq.s32.totalorder %s25, 0
    %p178 = por %p176, %p177
    %s180 = sadd.s32 %s179, 1
    %p183 = scmp.eq.s32.totalorder %s19, 1
    %p184 = scmp.ne.s32.totalorder %s179, %s181
    %p185 = scmp.eq.s32.totalorder %s19, 0
    %p186 = por %p184, %p185
    %p187 = scmp.ne.s32.totalorder %s179, %s181
    %p188 = scmp.eq.s32.totalorder %s24, 1
    %p189 = por %p187, %p188
    %p190 = scmp.ne.s32.totalorder %s181, %s182
    %p191 = scmp.eq.s32.totalorder %s24, 0
    %p192 = por %p190, %p191
    %p193 = scmp.ne.s32.totalorder %s181, %s182
    %p194 = scmp.eq.s32.totalorder %s25, 1
    %p195 = por %p193, %p194
    %p197 = scmp.ne.s32.totalorder %s182, %s196
    %p198 = scmp.eq.s32.totalorder %s25, 0
    %p199 = por %p197, %p198
    %s201 = sadd.s32 %s200, 1
    %p204 = scmp.eq.s32.totalorder %s19, 1
    %p205 = scmp.ne.s32.totalorder %s200, %s202
    %p206 = scmp.eq.s32.totalorder %s19, 0
    %p207 = por %p205, %p206
    %p208 = scmp.ne.s32.totalorder %s200, %s202
    %p209 = scmp.eq.s32.totalorder %s24, 1
    %p210 = por %p208, %p209
    %p211 = scmp.ne.s32.totalorder %s202, %s203
    %p212 = scmp.eq.s32.totalorder %s24, 0
    %p213 = por %p211, %p212
    %p214 = scmp.ne.s32.totalorder %s202, %s203
    %p215 = scmp.eq.s32.totalorder %s25, 1
    %p216 = por %p214, %p215
    %p218 = scmp.ne.s32.totalorder %s203, %s217
    %p219 = scmp.eq.s32.totalorder %s25, 0
    %p220 = por %p218, %p219
    %s222 = sadd.s32 %s221, 1
    %p225 = scmp.eq.s32.totalorder %s19, 1
    %p226 = scmp.ne.s32.totalorder %s221, %s223
    %p227 = scmp.eq.s32.totalorder %s19, 0
    %p228 = por %p226, %p227
    %p229 = scmp.ne.s32.totalorder %s221, %s223
    %p230 = scmp.eq.s32.totalorder %s24, 1
    %p231 = por %p229, %p230
    %p232 = scmp.ne.s32.totalorder %s223, %s224
    %p233 = scmp.eq.s32.totalorder %s24, 0
    %p234 = por %p232, %p233
    %p235 = scmp.ne.s32.totalorder %s223, %s224
    %p236 = scmp.eq.s32.totalorder %s25, 1
    %p237 = por %p235, %p236
    %p239 = scmp.ne.s32.totalorder %s224, %s238
    %p240 = scmp.eq.s32.totalorder %s25, 0
    %p241 = por %p239, %p240
    %s243 = sadd.s32 %s242, 1
    %p246 = scmp.eq.s32.totalorder %s19, 1
    %p247 = scmp.ne.s32.totalorder %s242, %s244
    %p248 = scmp.eq.s32.totalorder %s19, 0
    %p249 = por %p247, %p248
    %p250 = scmp.ne.s32.totalorder %s242, %s244
    %p251 = scmp.eq.s32.totalorder %s24, 1
    %p252 = por %p250, %p251
    %p253 = scmp.ne.s32.totalorder %s244, %s245
    %p254 = scmp.eq.s32.totalorder %s24, 0
    %p255 = por %p253, %p254
    %p256 = scmp.ne.s32.totalorder %s244, %s245
    %p257 = scmp.eq.s32.totalorder %s25, 1
    %p258 = por %p256, %p257
    %p260 = scmp.ne.s32.totalorder %s245, %s259
    %p261 = scmp.eq.s32.totalorder %s25, 0
    %p262 = por %p260, %p261
    %s264 = sadd.s32 %s263, 1
    %p267 = scmp.eq.s32.totalorder %s19, 1
    %p268 = scmp.ne.s32.totalorder %s263, %s265
    %p269 = scmp.eq.s32.totalorder %s19, 0
    %p270 = por %p268, %p269
    %p271 = scmp.ne.s32.totalorder %s263, %s265
    %p272 = scmp.eq.s32.totalorder %s24, 1
    %p273 = por %p271, %p272
    %p274 = scmp.ne.s32.totalorder %s265, %s266
    %p275 = scmp.eq.s32.totalorder %s24, 0
    %p276 = por %p274, %p275
    %p277 = scmp.ne.s32.totalorder %s265, %s266
    %p278 = scmp.eq.s32.totalorder %s25, 1
    %p279 = por %p277, %p278
    %p281 = scmp.ne.s32.totalorder %s266, %s280
    %p282 = scmp.eq.s32.totalorder %s25, 0
    %p283 = por %p281, %p282
    %s285 = sadd.s32 %s284, 1
    %p288 = scmp.eq.s32.totalorder %s19, 1
    %p289 = scmp.ne.s32.totalorder %s284, %s286
    %p290 = scmp.eq.s32.totalorder %s19, 0
    %p291 = por %p289, %p290
    %p292 = scmp.ne.s32.totalorder %s284, %s286
    %p293 = scmp.eq.s32.totalorder %s24, 1
    %p294 = por %p292, %p293
    %p295 = scmp.ne.s32.totalorder %s286, %s287
    %p296 = scmp.eq.s32.totalorder %s24, 0
    %p297 = por %p295, %p296
    %p298 = scmp.ne.s32.totalorder %s286, %s287
    %p299 = scmp.eq.s32.totalorder %s25, 1
    %p300 = por %p298, %p299
    %p302 = scmp.ne.s32.totalorder %s287, %s301
    %p303 = scmp.eq.s32.totalorder %s25, 0
    %p304 = por %p302, %p303
    %s305 = ssub.s32 %s19, %s26
    %p306 = scmp.eq.s32.totalorder %s305, 0
    %s308 = sadd.s32 %s307, 1
    %s309 = scalar_select %p306, %s307, %s308
    %p312 = pneg %p306
    %p313 = scmp.eq.s32.totalorder %s19, 1
    %p314 = por %p312, %p313
    %p315 = scmp.ne.s32.totalorder %s307, %s310
    %p316 = scmp.eq.s32.totalorder %s19, 0
    %p317 = por %p315, %p316
    %p318 = scmp.ne.s32.totalorder %s307, %s310
    %p319 = scmp.eq.s32.totalorder %s24, 1
    %p320 = por %p318, %p319
    %p321 = scmp.ne.s32.totalorder %s310, %s311
    %p322 = scmp.eq.s32.totalorder %s24, 0
    %p323 = por %p321, %p322
    %p324 = scmp.ne.s32.totalorder %s310, %s311
    %p325 = scmp.eq.s32.totalorder %s25, 1
    %p326 = por %p324, %p325
    %p328 = scmp.ne.s32.totalorder %s311, %s327
    %p329 = scmp.eq.s32.totalorder %s25, 0
    %p330 = por %p328, %p329
    %p331 = scmp.le.s32.totalorder 1, %s19
    %p332 = scmp.lt.s32.totalorder %s19, 3
    %p333 = pnand %p331, %p332
    %p334 = pneg %p333
    // Predicated region
    $region9: #{neural_network_forward.1} parent=5 // pred_check
      _
    $region10: #{neural_network_forward.1} parent=5 // pred_check_branch
      %336 = sbr.rel (%p333) target = $region12
    $region11: #{neural_network_forward.1} parent=5 // pred_region
      %s337 = ssub.s32 %s19, 1
      // Predicated region
      $region13: #{neural_network_forward.1} parent=11 // pred_check
        %p338 = pneg %p66
      $region14: #{neural_network_forward.1} parent=11 // pred_check_branch
        %340 = sbr.rel (%p338) target = $region16
      $region15: #{neural_network_forward.1} parent=11 // pred_region
        _
      $region16: #{neural_network_forward.1} parent=11 // pred_fallthru
        _
      // Predicated region
      $region17: #{neural_network_forward.1} parent=11 // pred_check
        %p341 = pneg %p87
      $region18: #{neural_network_forward.1} parent=11 // pred_check_branch
        %343 = sbr.rel (%p341) target = $region20
      $region19: #{neural_network_forward.1} parent=11 // pred_region
        _
      $region20: #{neural_network_forward.1} parent=11 // pred_fallthru
        _
      // Predicated region
      $region21: #{neural_network_forward.1} parent=11 // pred_check
        %p344 = pneg %p108
      $region22: #{neural_network_forward.1} parent=11 // pred_check_branch
        %346 = sbr.rel (%p344) target = $region24
      $region23: #{neural_network_forward.1} parent=11 // pred_region
        _
      $region24: #{neural_network_forward.1} parent=11 // pred_fallthru
        _
      // Predicated region
      $region25: #{neural_network_forward.1} parent=11 // pred_check
        %p347 = pneg %p129
      $region26: #{neural_network_forward.1} parent=11 // pred_check_branch
        %349 = sbr.rel (%p347) target = $region28
      $region27: #{neural_network_forward.1} parent=11 // pred_region
        _
      $region28: #{neural_network_forward.1} parent=11 // pred_fallthru
        _
      // Predicated region
      $region29: #{neural_network_forward.1} parent=11 // pred_check
        %p350 = pneg %p150
      $region30: #{neural_network_forward.1} parent=11 // pred_check_branch
        %352 = sbr.rel (%p350) target = $region32
      $region31: #{neural_network_forward.1} parent=11 // pred_region
        _
      $region32: #{neural_network_forward.1} parent=11 // pred_fallthru
        _
      // Predicated region
      $region33: #{neural_network_forward.1} parent=11 // pred_check
        %p353 = pneg %p171
      $region34: #{neural_network_forward.1} parent=11 // pred_check_branch
        %355 = sbr.rel (%p353) target = $region36
      $region35: #{neural_network_forward.1} parent=11 // pred_region
        _
      $region36: #{neural_network_forward.1} parent=11 // pred_fallthru
        _
      // Predicated region
      $region37: #{neural_network_forward.1} parent=11 // pred_check
        %p356 = pneg %p192
      $region38: #{neural_network_forward.1} parent=11 // pred_check_branch
        %358 = sbr.rel (%p356) target = $region40
      $region39: #{neural_network_forward.1} parent=11 // pred_region
        _
      $region40: #{neural_network_forward.1} parent=11 // pred_fallthru
        _
      // Predicated region
      $region41: #{neural_network_forward.1} parent=11 // pred_check
        %p359 = pneg %p213
      $region42: #{neural_network_forward.1} parent=11 // pred_check_branch
        %361 = sbr.rel (%p359) target = $region44
      $region43: #{neural_network_forward.1} parent=11 // pred_region
        _
      $region44: #{neural_network_forward.1} parent=11 // pred_fallthru
        _
      // Predicated region
      $region45: #{neural_network_forward.1} parent=11 // pred_check
        %p362 = pneg %p234
      $region46: #{neural_network_forward.1} parent=11 // pred_check_branch
        %364 = sbr.rel (%p362) target = $region48
      $region47: #{neural_network_forward.1} parent=11 // pred_region
        _
      $region48: #{neural_network_forward.1} parent=11 // pred_fallthru
        _
      // Predicated region
      $region49: #{neural_network_forward.1} parent=11 // pred_check
        %p365 = pneg %p255
      $region50: #{neural_network_forward.1} parent=11 // pred_check_branch
        %367 = sbr.rel (%p365) target = $region52
      $region51: #{neural_network_forward.1} parent=11 // pred_region
        _
      $region52: #{neural_network_forward.1} parent=11 // pred_fallthru
        _
      // Predicated region
      $region53: #{neural_network_forward.1} parent=11 // pred_check
        %p368 = pneg %p276
      $region54: #{neural_network_forward.1} parent=11 // pred_check_branch
        %370 = sbr.rel (%p368) target = $region56
      $region55: #{neural_network_forward.1} parent=11 // pred_region
        _
      $region56: #{neural_network_forward.1} parent=11 // pred_fallthru
        _
      // Predicated region
      $region57: #{neural_network_forward.1} parent=11 // pred_check
        %p371 = pneg %p297
      $region58: #{neural_network_forward.1} parent=11 // pred_check_branch
        %373 = sbr.rel (%p371) target = $region60
      $region59: #{neural_network_forward.1} parent=11 // pred_region
        _
      $region60: #{neural_network_forward.1} parent=11 // pred_fallthru
        _
    $region12: #{neural_network_forward.1} parent=5 // pred_fallthru
      _
    %p374 = scmp.lt.s32.totalorder %s19, 2
    // Predicated region
    $region61: #{neural_network_forward.1} parent=5 // pred_check
      %p375 = pneg %p374
    $region62: #{neural_network_forward.1} parent=5 // pred_check_branch
      %377 = sbr.rel (%p375) target = $region64
    $region63: #{neural_network_forward.1} parent=5 // pred_region
      // Predicated region
      $region65: #{neural_network_forward.1} parent=63 // pred_check
        %p378 = pneg %p39
      $region66: #{neural_network_forward.1} parent=63 // pred_check_branch
        %380 = sbr.rel (%p378) target = $region68
      $region67: #{neural_network_forward.1} parent=63 // pred_region
        %s381 = smul.u32 16, %s19
        %p382 = scmp.lt.s32.totalorder %s381, 31
        %s383 = scalar_select %p382, %s381, 31
        %s384 = smul.addr %s383, 8
        %s385 = scalar_lea.vmem %s0, %s384
        %s386 = smul.u32 16, %s19
      $region68: #{neural_network_forward.1} parent=63 // pred_fallthru
        _
    $region64: #{neural_network_forward.1} parent=5 // pred_fallthru
      _
    %p387 = scmp.le.s32.totalorder 1, %s19
    %p388 = scmp.lt.s32.totalorder %s19, 3
    %p389 = pnand %p387, %p388
    %p390 = pneg %p389
    // Predicated region
    $region69: #{neural_network_forward.1} parent=5 // pred_check
      _
    $region70: #{neural_network_forward.1} parent=5 // pred_check_branch
      %392 = sbr.rel (%p389) target = $region72
    $region71: #{neural_network_forward.1} parent=5 // pred_region
      %s393 = ssub.s32 %s19, 1
      %s394 = smul.u32 16, %s24
      %p395 = scmp.lt.s32.totalorder %s394, 31
      %s396 = scalar_select %p395, %s394, 31
      %s397 = smul.addr %s396, 8
      %s398 = scalar_lea.vmem %s0, %s397
      %p399 = pneg %p45
      %p400 = pneg %p42
      %p401 = pneg %p66
      %p402 = pneg %p63
      %p403 = pneg %p87
      %p404 = pneg %p84
      %p405 = pneg %p108
      %p406 = pneg %p105
      %p407 = pneg %p129
      %p408 = pneg %p126
      %p409 = pneg %p150
      %p410 = pneg %p147
      %p411 = pneg %p171
      %p412 = pneg %p168
      %p413 = pneg %p192
      %p414 = pneg %p189
      %p415 = pneg %p213
      %p416 = pneg %p210
      %p417 = pneg %p234
      %p418 = pneg %p231
      %p419 = pneg %p255
      %p420 = pneg %p252
      %p421 = pneg %p276
      %p422 = pneg %p273
      %p423 = pneg %p297
      %p424 = pneg %p294
      %p425 = pneg %p323
      %p426 = pneg %p320
      %s427 = smul.u32 16, %s24
      %p428 = scmp.lt.s32.totalorder %s427, 31
      %s429 = scalar_select %p428, %s427, 31
      %s430 = smul.addr %s429, 8
      %s431 = scalar_lea.vmem %s13, %s430
      %s432 = smul.u32 16, %s24
      %p433 = scmp.lt.s32.totalorder %s432, 31
      %s434 = scalar_select %p433, %s432, 31
      %s435 = smul.addr %s434, 8
      %s436 = scalar_lea.vmem %s0, %s435
      %s437 = smul.u32 16, %s24
      %s438 = smul.u32 16, %s24
      %p439 = scmp.lt.s32.totalorder %s438, 31
      %s440 = scalar_select %p439, %s438, 31
      %s441 = smul.addr %s440, 8
      %s442 = scalar_lea.vmem %s13, %s441
      %s443 = smul.u32 16, %s24
      %v444 = vld [vmem:[%s1] sm:$0xff]
      %v445 = vld [vmem:[%s1 + $0x8] sm:$0xff]
      %v446 = vld [vmem:[%s1 + $0x10] sm:$0xff]
      %v447 = vld [vmem:[%s1 + $0x18] sm:$0xff]
      %v448 = vld [vmem:[%s1 + $0x20] sm:$0xff]
      %v449 = vld [vmem:[%s1 + $0x28] sm:$0xff]
      %v450 = vld [vmem:[%s1 + $0x30] sm:$0xff]
      %v451 = vld [vmem:[%s1 + $0x38] sm:$0xff]
      %v452 = vld [vmem:[%s3] sm:$0xff]
      %v453 = vld [vmem:[%s3 + $0x8] sm:$0xff]
      %v454 = vld [vmem:[%s3 + $0x10] sm:$0xff]
      %v455 = vld [vmem:[%s3 + $0x18] sm:$0xff]
      %v456 = vld [vmem:[%s3 + $0x20] sm:$0xff]
      %v457 = vld [vmem:[%s3 + $0x28] sm:$0xff]
      %v458 = vld [vmem:[%s3 + $0x30] sm:$0xff]
      %v459 = vld [vmem:[%s3 + $0x38] sm:$0xff]
      %v460 = vld [vmem:[%s3 + $0x40] sm:$0xff]
      %v461 = vld [vmem:[%s3 + $0x48] sm:$0xff]
      %v462 = vld [vmem:[%s3 + $0x50] sm:$0xff]
      %v463 = vld [vmem:[%s3 + $0x58] sm:$0xff]
      %v464 = vld [vmem:[%s3 + $0x60] sm:$0xff]
      %v465 = vld [vmem:[%s3 + $0x68] sm:$0xff]
      %v466 = vld [vmem:[%s3 + $0x70] sm:$0xff]
      %v467 = vld [vmem:[%s3 + $0x78] sm:$0xff]
      %v468 = vld [vmem:[%s3 + $0x80] sm:$0xff]
      %v469 = vld [vmem:[%s3 + $0x88] sm:$0xff]
      %v470 = vld [vmem:[%s3 + $0x90] sm:$0xff]
      %v471 = vld [vmem:[%s3 + $0x98] sm:$0xff]
      %v472 = vld [vmem:[%s3 + $0xa0] sm:$0xff]
      %v473 = vld [vmem:[%s3 + $0xa8] sm:$0xff]
      %v474 = vld [vmem:[%s3 + $0xb0] sm:$0xff]
      %v475 = vld [vmem:[%s3 + $0xb8] sm:$0xff]
      %v476 = vld [vmem:[%s3 + $0xc0] sm:$0xff]
      %v477 = vld [vmem:[%s3 + $0xc8] sm:$0xff]
      %v478 = vld [vmem:[%s3 + $0xd0] sm:$0xff]
      %v479 = vld [vmem:[%s3 + $0xd8] sm:$0xff]
      %v480 = vld [vmem:[%s3 + $0xe0] sm:$0xff]
      %v481 = vld [vmem:[%s3 + $0xe8] sm:$0xff]
      %v482 = vld [vmem:[%s3 + $0xf0] sm:$0xff]
      %v483 = vld [vmem:[%s3 + $0xf8] sm:$0xff]
      %v484 = vld [vmem:[%s3 + $0x100] sm:$0xff]
      %v485 = vld [vmem:[%s3 + $0x108] sm:$0xff]
      %v486 = vld [vmem:[%s3 + $0x110] sm:$0xff]
      %v487 = vld [vmem:[%s3 + $0x118] sm:$0xff]
      %v488 = vld [vmem:[%s3 + $0x120] sm:$0xff]
      %v489 = vld [vmem:[%s3 + $0x128] sm:$0xff]
      %v490 = vld [vmem:[%s3 + $0x130] sm:$0xff]
      %v491 = vld [vmem:[%s3 + $0x138] sm:$0xff]
      %v492 = vld [vmem:[%s3 + $0x140] sm:$0xff]
      %v493 = vld [vmem:[%s3 + $0x148] sm:$0xff]
      %v494 = vld [vmem:[%s3 + $0x150] sm:$0xff]
      %v495 = vld [vmem:[%s3 + $0x158] sm:$0xff]
      %v496 = vld [vmem:[%s3 + $0x160] sm:$0xff]
      %v497 = vld [vmem:[%s3 + $0x168] sm:$0xff]
      %v498 = vld [vmem:[%s3 + $0x170] sm:$0xff]
      %v499 = vld [vmem:[%s3 + $0x178] sm:$0xff]
      %v500 = vld [vmem:[%s3 + $0x180] sm:$0xff]
      %v501 = vld [vmem:[%s3 + $0x188] sm:$0xff]
      %v502 = vld [vmem:[%s3 + $0x190] sm:$0xff]
      %v503 = vld [vmem:[%s3 + $0x198] sm:$0xff]
      %v504 = vld [vmem:[%s3 + $0x1a0] sm:$0xff]
      %v505 = vld [vmem:[%s3 + $0x1a8] sm:$0xff]
      %v506 = vld [vmem:[%s3 + $0x1b0] sm:$0xff]
      %v507 = vld [vmem:[%s3 + $0x1b8] sm:$0xff]
      %v508 = vld [vmem:[%s3 + $0x1c0] sm:$0xff]
      %v509 = vld [vmem:[%s3 + $0x1c8] sm:$0xff]
      %v510 = vld [vmem:[%s3 + $0x1d0] sm:$0xff]
      %v511 = vld [vmem:[%s3 + $0x1d8] sm:$0xff]
      %v512 = vld [vmem:[%s3 + $0x1e0] sm:$0xff]
      %v513 = vld [vmem:[%s3 + $0x1e8] sm:$0xff]
      %v514 = vld [vmem:[%s3 + $0x1f0] sm:$0xff]
      %v515 = vld [vmem:[%s3 + $0x1f8] sm:$0xff]
      %v516 = vld [vmem:[%s5] sm:$0xff]
      %v517 = vld [vmem:[%s5 + $0x8] sm:$0xff]
      %v518 = vld [vmem:[%s5 + $0x10] sm:$0xff]
      %v519 = vld [vmem:[%s5 + $0x18] sm:$0xff]
      %v520 = vld [vmem:[%s5 + $0x20] sm:$0xff]
      %v521 = vld [vmem:[%s5 + $0x28] sm:$0xff]
      %v522 = vld [vmem:[%s5 + $0x30] sm:$0xff]
      %v523 = vld [vmem:[%s5 + $0x38] sm:$0xff]
      %v524 = vld [vmem:[%s5 + $0x40] sm:$0xff]
      %v525 = vld [vmem:[%s5 + $0x48] sm:$0xff]
      %v526 = vld [vmem:[%s5 + $0x50] sm:$0xff]
      %v527 = vld [vmem:[%s5 + $0x58] sm:$0xff]
      %v528 = vld [vmem:[%s5 + $0x60] sm:$0xff]
      %v529 = vld [vmem:[%s5 + $0x68] sm:$0xff]
      %v530 = vld [vmem:[%s5 + $0x70] sm:$0xff]
      %v531 = vld [vmem:[%s5 + $0x78] sm:$0xff]
      %v532 = vld [vmem:[%s5 + $0x80] sm:$0xff]
      %v533 = vld [vmem:[%s5 + $0x88] sm:$0xff]
      %v534 = vld [vmem:[%s5 + $0x90] sm:$0xff]
      %v535 = vld [vmem:[%s5 + $0x98] sm:$0xff]
      %v536 = vld [vmem:[%s5 + $0xa0] sm:$0xff]
      %v537 = vld [vmem:[%s5 + $0xa8] sm:$0xff]
      %v538 = vld [vmem:[%s5 + $0xb0] sm:$0xff]
      %v539 = vld [vmem:[%s5 + $0xb8] sm:$0xff]
      %v540 = vld [vmem:[%s5 + $0xc0] sm:$0xff]
      %v541 = vld [vmem:[%s5 + $0xc8] sm:$0xff]
      %v542 = vld [vmem:[%s5 + $0xd0] sm:$0xff]
      %v543 = vld [vmem:[%s5 + $0xd8] sm:$0xff]
      %v544 = vld [vmem:[%s5 + $0xe0] sm:$0xff]
      %v545 = vld [vmem:[%s5 + $0xe8] sm:$0xff]
      %v546 = vld [vmem:[%s5 + $0xf0] sm:$0xff]
      %v547 = vld [vmem:[%s5 + $0xf8] sm:$0xff]
      %v548 = vld [vmem:[%s5 + $0x100] sm:$0xff]
      %v549 = vld [vmem:[%s5 + $0x108] sm:$0xff]
      %v550 = vld [vmem:[%s5 + $0x110] sm:$0xff]
      %v551 = vld [vmem:[%s5 + $0x118] sm:$0xff]
      %v552 = vld [vmem:[%s5 + $0x120] sm:$0xff]
      %v553 = vld [vmem:[%s5 + $0x128] sm:$0xff]
      %v554 = vld [vmem:[%s5 + $0x130] sm:$0xff]
      %v555 = vld [vmem:[%s5 + $0x138] sm:$0xff]
      %v556 = vld [vmem:[%s5 + $0x140] sm:$0xff]
      %v557 = vld [vmem:[%s5 + $0x148] sm:$0xff]
      %v558 = vld [vmem:[%s5 + $0x150] sm:$0xff]
      %v559 = vld [vmem:[%s5 + $0x158] sm:$0xff]
      %v560 = vld [vmem:[%s5 + $0x160] sm:$0xff]
      %v561 = vld [vmem:[%s5 + $0x168] sm:$0xff]
      %v562 = vld [vmem:[%s5 + $0x170] sm:$0xff]
      %v563 = vld [vmem:[%s5 + $0x178] sm:$0xff]
      %v564 = vld [vmem:[%s5 + $0x180] sm:$0xff]
      %v565 = vld [vmem:[%s5 + $0x188] sm:$0xff]
      %v566 = vld [vmem:[%s5 + $0x190] sm:$0xff]
      %v567 = vld [vmem:[%s5 + $0x198] sm:$0xff]
      %v568 = vld [vmem:[%s5 + $0x1a0] sm:$0xff]
      %v569 = vld [vmem:[%s5 + $0x1a8] sm:$0xff]
      %v570 = vld [vmem:[%s5 + $0x1b0] sm:$0xff]
      %v571 = vld [vmem:[%s5 + $0x1b8] sm:$0xff]
      %v572 = vld [vmem:[%s5 + $0x1c0] sm:$0xff]
      %v573 = vld [vmem:[%s5 + $0x1c8] sm:$0xff]
      %v574 = vld [vmem:[%s5 + $0x1d0] sm:$0xff]
      %v575 = vld [vmem:[%s5 + $0x1d8] sm:$0xff]
      %v576 = vld [vmem:[%s5 + $0x1e0] sm:$0xff]
      %v577 = vld [vmem:[%s5 + $0x1e8] sm:$0xff]
      %v578 = vld [vmem:[%s5 + $0x1f0] sm:$0xff]
      %v579 = vld [vmem:[%s5 + $0x1f8] sm:$0xff]
      %v580 = vld [vmem:[%s7] sm:$0xff]
      %v581 = vld [vmem:[%s7 + $0x8] sm:$0xff]
      %v582 = vld [vmem:[%s7 + $0x10] sm:$0xff]
      %v583 = vld [vmem:[%s7 + $0x18] sm:$0xff]
      %v584 = vld [vmem:[%s7 + $0x20] sm:$0xff]
      %v585 = vld [vmem:[%s7 + $0x28] sm:$0xff]
      %v586 = vld [vmem:[%s7 + $0x30] sm:$0xff]
      %v587 = vld [vmem:[%s7 + $0x38] sm:$0xff]
      %v588 = vld [vmem:[%s7 + $0x40] sm:$0xff]
      %v589 = vld [vmem:[%s7 + $0x48] sm:$0xff]
      %v590 = vld [vmem:[%s7 + $0x50] sm:$0xff]
      %v591 = vld [vmem:[%s7 + $0x58] sm:$0xff]
      %v592 = vld [vmem:[%s7 + $0x60] sm:$0xff]
      %v593 = vld [vmem:[%s7 + $0x68] sm:$0xff]
      %v594 = vld [vmem:[%s7 + $0x70] sm:$0xff]
      %v595 = vld [vmem:[%s7 + $0x78] sm:$0xff]
      %v596 = vld [vmem:[%s7 + $0x80] sm:$0xff]
      %v597 = vld [vmem:[%s7 + $0x88] sm:$0xff]
      %v598 = vld [vmem:[%s7 + $0x90] sm:$0xff]
      %v599 = vld [vmem:[%s7 + $0x98] sm:$0xff]
      %v600 = vld [vmem:[%s7 + $0xa0] sm:$0xff]
      %v601 = vld [vmem:[%s7 + $0xa8] sm:$0xff]
      %v602 = vld [vmem:[%s7 + $0xb0] sm:$0xff]
      %v603 = vld [vmem:[%s7 + $0xb8] sm:$0xff]
      %v604 = vld [vmem:[%s7 + $0xc0] sm:$0xff]
      %v605 = vld [vmem:[%s7 + $0xc8] sm:$0xff]
      %v606 = vld [vmem:[%s7 + $0xd0] sm:$0xff]
      %v607 = vld [vmem:[%s7 + $0xd8] sm:$0xff]
      %v608 = vld [vmem:[%s7 + $0xe0] sm:$0xff]
      %v609 = vld [vmem:[%s7 + $0xe8] sm:$0xff]
      %v610 = vld [vmem:[%s7 + $0xf0] sm:$0xff]
      %v611 = vld [vmem:[%s7 + $0xf8] sm:$0xff]
      %v612 = vld [vmem:[%s7 + $0x100] sm:$0xff]
      %v613 = vld [vmem:[%s7 + $0x108] sm:$0xff]
      %v614 = vld [vmem:[%s7 + $0x110] sm:$0xff]
      %v615 = vld [vmem:[%s7 + $0x118] sm:$0xff]
      %v616 = vld [vmem:[%s7 + $0x120] sm:$0xff]
      %v617 = vld [vmem:[%s7 + $0x128] sm:$0xff]
      %v618 = vld [vmem:[%s7 + $0x130] sm:$0xff]
      %v619 = vld [vmem:[%s7 + $0x138] sm:$0xff]
      %v620 = vld [vmem:[%s7 + $0x140] sm:$0xff]
      %v621 = vld [vmem:[%s7 + $0x148] sm:$0xff]
      %v622 = vld [vmem:[%s7 + $0x150] sm:$0xff]
      %v623 = vld [vmem:[%s7 + $0x158] sm:$0xff]
      %v624 = vld [vmem:[%s7 + $0x160] sm:$0xff]
      %v625 = vld [vmem:[%s7 + $0x168] sm:$0xff]
      %v626 = vld [vmem:[%s7 + $0x170] sm:$0xff]
      %v627 = vld [vmem:[%s7 + $0x178] sm:$0xff]
      %v628 = vld [vmem:[%s7 + $0x180] sm:$0xff]
      %v629 = vld [vmem:[%s7 + $0x188] sm:$0xff]
      %v630 = vld [vmem:[%s7 + $0x190] sm:$0xff]
      %v631 = vld [vmem:[%s7 + $0x198] sm:$0xff]
      %v632 = vld [vmem:[%s7 + $0x1a0] sm:$0xff]
      %v633 = vld [vmem:[%s7 + $0x1a8] sm:$0xff]
      %v634 = vld [vmem:[%s7 + $0x1b0] sm:$0xff]
      %v635 = vld [vmem:[%s7 + $0x1b8] sm:$0xff]
      %v636 = vld [vmem:[%s7 + $0x1c0] sm:$0xff]
      %v637 = vld [vmem:[%s7 + $0x1c8] sm:$0xff]
      %v638 = vld [vmem:[%s7 + $0x1d0] sm:$0xff]
      %v639 = vld [vmem:[%s7 + $0x1d8] sm:$0xff]
      %v640 = vld [vmem:[%s7 + $0x1e0] sm:$0xff]
      %v641 = vld [vmem:[%s7 + $0x1e8] sm:$0xff]
      %v642 = vld [vmem:[%s7 + $0x1f0] sm:$0xff]
      %v643 = vld [vmem:[%s7 + $0x1f8] sm:$0xff]
      %v644 = vld [vmem:[%s9] sm:$0xff]
      %v645 = vld [vmem:[%s9 + $0x8] sm:$0xff]
      %v646 = vld [vmem:[%s9 + $0x10] sm:$0xff]
      %v647 = vld [vmem:[%s9 + $0x18] sm:$0xff]
      %v648 = vld [vmem:[%s9 + $0x20] sm:$0xff]
      %v649 = vld [vmem:[%s9 + $0x28] sm:$0xff]
      %v650 = vld [vmem:[%s9 + $0x30] sm:$0xff]
      %v651 = vld [vmem:[%s9 + $0x38] sm:$0xff]
      %v652 = vld [vmem:[%s9 + $0x40] sm:$0xff]
      %v653 = vld [vmem:[%s9 + $0x48] sm:$0xff]
      %v654 = vld [vmem:[%s9 + $0x50] sm:$0xff]
      %v655 = vld [vmem:[%s9 + $0x58] sm:$0xff]
      %v656 = vld [vmem:[%s9 + $0x60] sm:$0xff]
      %v657 = vld [vmem:[%s9 + $0x68] sm:$0xff]
      %v658 = vld [vmem:[%s9 + $0x70] sm:$0xff]
      %v659 = vld [vmem:[%s9 + $0x78] sm:$0xff]
      %v660 = vld [vmem:[%s9 + $0x80] sm:$0xff]
      %v661 = vld [vmem:[%s9 + $0x88] sm:$0xff]
      %v662 = vld [vmem:[%s9 + $0x90] sm:$0xff]
      %v663 = vld [vmem:[%s9 + $0x98] sm:$0xff]
      %v664 = vld [vmem:[%s9 + $0xa0] sm:$0xff]
      %v665 = vld [vmem:[%s9 + $0xa8] sm:$0xff]
      %v666 = vld [vmem:[%s9 + $0xb0] sm:$0xff]
      %v667 = vld [vmem:[%s9 + $0xb8] sm:$0xff]
      %v668 = vld [vmem:[%s9 + $0xc0] sm:$0xff]
      %v669 = vld [vmem:[%s9 + $0xc8] sm:$0xff]
      %v670 = vld [vmem:[%s9 + $0xd0] sm:$0xff]
      %v671 = vld [vmem:[%s9 + $0xd8] sm:$0xff]
      %v672 = vld [vmem:[%s9 + $0xe0] sm:$0xff]
      %v673 = vld [vmem:[%s9 + $0xe8] sm:$0xff]
      %v674 = vld [vmem:[%s9 + $0xf0] sm:$0xff]
      %v675 = vld [vmem:[%s9 + $0xf8] sm:$0xff]
      %v676 = vld [vmem:[%s9 + $0x100] sm:$0xff]
      %v677 = vld [vmem:[%s9 + $0x108] sm:$0xff]
      %v678 = vld [vmem:[%s9 + $0x110] sm:$0xff]
      %v679 = vld [vmem:[%s9 + $0x118] sm:$0xff]
      %v680 = vld [vmem:[%s9 + $0x120] sm:$0xff]
      %v681 = vld [vmem:[%s9 + $0x128] sm:$0xff]
      %v682 = vld [vmem:[%s9 + $0x130] sm:$0xff]
      %v683 = vld [vmem:[%s9 + $0x138] sm:$0xff]
      %v684 = vld [vmem:[%s9 + $0x140] sm:$0xff]
      %v685 = vld [vmem:[%s9 + $0x148] sm:$0xff]
      %v686 = vld [vmem:[%s9 + $0x150] sm:$0xff]
      %v687 = vld [vmem:[%s9 + $0x158] sm:$0xff]
      %v688 = vld [vmem:[%s9 + $0x160] sm:$0xff]
      %v689 = vld [vmem:[%s9 + $0x168] sm:$0xff]
      %v690 = vld [vmem:[%s9 + $0x170] sm:$0xff]
      %v691 = vld [vmem:[%s9 + $0x178] sm:$0xff]
      %v692 = vld [vmem:[%s9 + $0x180] sm:$0xff]
      %v693 = vld [vmem:[%s9 + $0x188] sm:$0xff]
      %v694 = vld [vmem:[%s9 + $0x190] sm:$0xff]
      %v695 = vld [vmem:[%s9 + $0x198] sm:$0xff]
      %v696 = vld [vmem:[%s9 + $0x1a0] sm:$0xff]
      %v697 = vld [vmem:[%s9 + $0x1a8] sm:$0xff]
      %v698 = vld [vmem:[%s9 + $0x1b0] sm:$0xff]
      %v699 = vld [vmem:[%s9 + $0x1b8] sm:$0xff]
      %v700 = vld [vmem:[%s9 + $0x1c0] sm:$0xff]
      %v701 = vld [vmem:[%s9 + $0x1c8] sm:$0xff]
      %v702 = vld [vmem:[%s9 + $0x1d0] sm:$0xff]
      %v703 = vld [vmem:[%s9 + $0x1d8] sm:$0xff]
      %v704 = vld [vmem:[%s9 + $0x1e0] sm:$0xff]
      %v705 = vld [vmem:[%s9 + $0x1e8] sm:$0xff]
      %v706 = vld [vmem:[%s9 + $0x1f0] sm:$0xff]
      %v707 = vld [vmem:[%s9 + $0x1f8] sm:$0xff]
      %v708 = vld [vmem:[%s11] sm:$0xff]
      %v709 = vld [vmem:[%s11 + $0x8] sm:$0xff]
      %v710 = vld [vmem:[%s11 + $0x10] sm:$0xff]
      %v711 = vld [vmem:[%s11 + $0x18] sm:$0xff]
      %v712 = vld [vmem:[%s11 + $0x20] sm:$0xff]
      %v713 = vld [vmem:[%s11 + $0x28] sm:$0xff]
      %v714 = vld [vmem:[%s11 + $0x30] sm:$0xff]
      %v715 = vld [vmem:[%s11 + $0x38] sm:$0xff]
      %v716 = vld [vmem:[%s11 + $0x40] sm:$0xff]
      %v717 = vld [vmem:[%s11 + $0x48] sm:$0xff]
      %v718 = vld [vmem:[%s11 + $0x50] sm:$0xff]
      %v719 = vld [vmem:[%s11 + $0x58] sm:$0xff]
      %v720 = vld [vmem:[%s11 + $0x60] sm:$0xff]
      %v721 = vld [vmem:[%s11 + $0x68] sm:$0xff]
      %v722 = vld [vmem:[%s11 + $0x70] sm:$0xff]
      %v723 = vld [vmem:[%s11 + $0x78] sm:$0xff]
      %v724 = vld [vmem:[%s11 + $0x80] sm:$0xff]
      %v725 = vld [vmem:[%s11 + $0x88] sm:$0xff]
      %v726 = vld [vmem:[%s11 + $0x90] sm:$0xff]
      %v727 = vld [vmem:[%s11 + $0x98] sm:$0xff]
      %v728 = vld [vmem:[%s11 + $0xa0] sm:$0xff]
      %v729 = vld [vmem:[%s11 + $0xa8] sm:$0xff]
      %v730 = vld [vmem:[%s11 + $0xb0] sm:$0xff]
      %v731 = vld [vmem:[%s11 + $0xb8] sm:$0xff]
      %v732 = vld [vmem:[%s11 + $0xc0] sm:$0xff]
      %v733 = vld [vmem:[%s11 + $0xc8] sm:$0xff]
      %v734 = vld [vmem:[%s11 + $0xd0] sm:$0xff]
      %v735 = vld [vmem:[%s11 + $0xd8] sm:$0xff]
      %v736 = vld [vmem:[%s11 + $0xe0] sm:$0xff]
      %v737 = vld [vmem:[%s11 + $0xe8] sm:$0xff]
      %v738 = vld [vmem:[%s11 + $0xf0] sm:$0xff]
      %v739 = vld [vmem:[%s11 + $0xf8] sm:$0xff]
      %v740 = vld [vmem:[%s2] sm:$0x3]
      %v741 = vld [vmem:[%s4] sm:$0x3]
      %v742 = vld [vmem:[%s6] sm:$0x3]
      %v743 = vld [vmem:[%s8] sm:$0x3]
      %v744 = vld [vmem:[%s10] sm:$0x3]
      %v745 = vld [vmem:[%s12] sm:$0x1]
      %v746 = vld [vmem:[%s436] sm:$0xff]
      %v747 = vld [vmem:[%s436 + $0x8] sm:$0xff]
      %v748 = vld [vmem:[%s436 + $0x10] sm:$0xff]
      %v749 = vld [vmem:[%s436 + $0x18] sm:$0xff]
      %v750 = vld [vmem:[%s436 + $0x20] sm:$0xff]
      %v751 = vld [vmem:[%s436 + $0x28] sm:$0xff]
      %v752 = vld [vmem:[%s436 + $0x30] sm:$0xff]
      %v753 = vld [vmem:[%s436 + $0x38] sm:$0xff]
      %v754 = vld [vmem:[%s436 + $0x40] sm:$0xff]
      %v755 = vld [vmem:[%s436 + $0x48] sm:$0xff]
      %v756 = vld [vmem:[%s436 + $0x50] sm:$0xff]
      %v757 = vld [vmem:[%s436 + $0x58] sm:$0xff]
      %v758 = vld [vmem:[%s436 + $0x60] sm:$0xff]
      %v759 = vld [vmem:[%s436 + $0x68] sm:$0xff]
      %v760 = vld [vmem:[%s436 + $0x70] sm:$0xff]
      %v761 = vld [vmem:[%s436 + $0x78] sm:$0xff]
      %vm762 = vcmask 130048
      %v764 = vsel %vm762, %v746, 0
      %v767 = vsel %vm762, %v747, 0
      %v770 = vsel %vm762, %v748, 0
      %v773 = vsel %vm762, %v749, 0
      %v776 = vsel %vm762, %v750, 0
      %v779 = vsel %vm762, %v751, 0
      %v782 = vsel %vm762, %v752, 0
      %v785 = vsel %vm762, %v753, 0
      %v788 = vsel %vm762, %v754, 0
      %v791 = vsel %vm762, %v755, 0
      %v794 = vsel %vm762, %v756, 0
      %v797 = vsel %vm762, %v757, 0
      %v800 = vsel %vm762, %v758, 0
      %v803 = vsel %vm762, %v759, 0
      %v806 = vsel %vm762, %v760, 0
      %v809 = vsel %vm762, %v761, 0
      %811 = vmatprep.subr.mxu0 %v445
      %812 = vmatpush1.msra.mxu0 %v444
      %813 = vmatprep.subr.mxu0 %v449
      %814 = vmatpush1.msra.mxu0 %v448
      %815 = vmatprep.subr.mxu0 0.0
      %816 = vmatpush1.msra.mxu0 0.0
      %817 = vmatprep.subr.mxu0 0.0
      %818 = vmatpush1.msra.mxu0 0.0
      %819 = vmatprep.subr.mxu0 0.0
      %820 = vmatpush1.msra.mxu0 0.0
      %821 = vmatprep.subr.mxu0 0.0
      %822 = vmatpush1.msra.mxu0 0.0
      %823 = vmatprep.subr.mxu0 0.0
      %824 = vmatpush1.msra.mxu0 0.0
      %825 = vmatprep.subr.mxu0 0.0
      %826 = vmatpush1.msra.mxu0 0.0
      %827 = vmatprep.subr.mxu0 0.0
      %828 = vmatpush1.msra.mxu0 0.0
      %829 = vmatprep.subr.mxu0 0.0
      %830 = vmatpush1.msra.mxu0 0.0
      %831 = vmatprep.subr.mxu0 0.0
      %832 = vmatpush1.msra.mxu0 0.0
      %833 = vmatprep.subr.mxu0 0.0
      %834 = vmatpush1.msra.mxu0 0.0
      %835 = vmatprep.subr.mxu0 0.0
      %836 = vmatpush1.msra.mxu0 0.0
      %837 = vmatprep.subr.mxu0 0.0
      %838 = vmatpush1.msra.mxu0 0.0
      %839 = vmatprep.subr.mxu0 0.0
      %840 = vmatpush1.msra.mxu0 0.0
      %841 = vmatprep.subr.mxu0 0.0
      %842 = vmatpush1.msra.mxu0 0.0
      %843 = vmatprep.subr.mxu0 0.0
      %844 = vmatpush1.msra.mxu0 0.0
      %845 = vmatprep.subr.mxu0 0.0
      %846 = vmatpush1.msra.mxu0 0.0
      %847 = vmatprep.subr.mxu0 0.0
      %848 = vmatpush1.msra.mxu0 0.0
      %849 = vmatprep.subr.mxu0 0.0
      %850 = vmatpush1.msra.mxu0 0.0
      %851 = vmatprep.subr.mxu0 0.0
      %852 = vmatpush1.msra.mxu0 0.0
      %853 = vmatprep.subr.mxu0 0.0
      %854 = vmatpush1.msra.mxu0 0.0
      %855 = vmatprep.subr.mxu0 0.0
      %856 = vmatpush1.msra.mxu0 0.0
      %857 = vmatprep.subr.mxu0 0.0
      %858 = vmatpush1.msra.mxu0 0.0
      %859 = vmatprep.subr.mxu0 0.0
      %860 = vmatpush1.msra.mxu0 0.0
      %861 = vmatprep.subr.mxu0 0.0
      %862 = vmatpush1.msra.mxu0 0.0
      %863 = vmatprep.subr.mxu0 0.0
      %864 = vmatpush1.msra.mxu0 0.0
      %865 = vmatprep.subr.mxu0 0.0
      %866 = vmatpush1.msra.mxu0 0.0
      %867 = vmatprep.subr.mxu0 0.0
      %868 = vmatpush1.msra.mxu0 0.0
      %869 = vmatprep.subr.mxu0 0.0
      %870 = vmatpush1.msra.mxu0 0.0
      %871 = vmatprep.subr.mxu0 0.0
      %872 = vmatpush1.msra.mxu0 0.0
      %873 = vmatprep.subr.mxu0 0.0
      %874 = vmatpush1.msra.mxu0 0.0
      %875 = vmatprep.mubr.f32.mxu0 0.0
      %876 = vmatmul.mubr.f32.gmra.mrb[0].mxu0 %v764
      %v877 = vpop.f32.mrb[0].mxu0
      %v878 = vadd.f32 0.0, %v877
      %v879 = vpop.f32.mrb[0].mxu0
      %v880 = vadd.f32 0.0, %v879
      %881 = vmatprep.mubr.f32.mxu0 0.0
      %882 = vmatmul.mubr.f32.gmra.mrb[0].mxu0 %v767
      %v883 = vpop.f32.mrb[0].mxu0
      %v884 = vadd.f32 0.0, %v883
      %v885 = vpop.f32.mrb[0].mxu0
      %v886 = vadd.f32 0.0, %v885
      %887 = vmatprep.mubr.f32.mxu0 0.0
      %888 = vmatmul.mubr.f32.gmra.mrb[0].mxu0 %v770
      %v889 = vpop.f32.mrb[0].mxu0
      %v890 = vadd.f32 0.0, %v889
      %v891 = vpop.f32.mrb[0].mxu0
      %v892 = vadd.f32 0.0, %v891
      %893 = vmatprep.mubr.f32.mxu0 0.0
      %894 = vmatmul.mubr.f32.gmra.mrb[0].mxu0 %v773
      %v895 = vpop.f32.mrb[0].mxu0
      %v896 = vadd.f32 0.0, %v895
      %v897 = vpop.f32.mrb[0].mxu0
      %v898 = vadd.f32 0.0, %v897
      %899 = vmatprep.mubr.f32.mxu0 0.0
      %900 = vmatmul.mubr.f32.gmra.mrb[0].mxu0 %v776
      %v901 = vpop.f32.mrb[0].mxu0
      %v902 = vadd.f32 0.0, %v901
      %v903 = vpop.f32.mrb[0].mxu0
      %v904 = vadd.f32 0.0, %v903
      %905 = vmatprep.mubr.f32.mxu0 0.0
      %906 = vmatmul.mubr.f32.gmra.mrb[0].mxu0 %v779
      %v907 = vpop.f32.mrb[0].mxu0
      %v908 = vadd.f32 0.0, %v907
      %v909 = vpop.f32.mrb[0].mxu0
      %v910 = vadd.f32 0.0, %v909
      %911 = vmatprep.mubr.f32.mxu0 0.0
      %912 = vmatmul.mubr.f32.gmra.mrb[0].mxu0 %v782
      %v913 = vpop.f32.mrb[0].mxu0
      %v914 = vadd.f32 0.0, %v913
      %v915 = vpop.f32.mrb[0].mxu0
      %v916 = vadd.f32 0.0, %v915
      %917 = vmatprep.mubr.f32.mxu0 0.0
      %918 = vmatmul.mubr.f32.gmra.mrb[0].mxu0 %v785
      %v919 = vpop.f32.mrb[0].mxu0
      %v920 = vadd.f32 0.0, %v919
      %v921 = vpop.f32.mrb[0].mxu0
      %v922 = vadd.f32 0.0, %v921
      %923 = vmatprep.mubr.f32.mxu0 0.0
      %924 = vmatmul.mubr.f32.gmra.mrb[0].mxu0 %v788
      %v925 = vpop.f32.mrb[0].mxu0
      %v926 = vadd.f32 0.0, %v925
      %v927 = vpop.f32.mrb[0].mxu0
      %v928 = vadd.f32 0.0, %v927
      %929 = vmatprep.mubr.f32.mxu0 0.0
      %930 = vmatmul.mubr.f32.gmra.mrb[0].mxu0 %v791
      %v931 = vpop.f32.mrb[0].mxu0
      %v932 = vadd.f32 0.0, %v931
      %v933 = vpop.f32.mrb[0].mxu0
      %v934 = vadd.f32 0.0, %v933
      %935 = vmatprep.mubr.f32.mxu0 0.0
      %936 = vmatmul.mubr.f32.gmra.mrb[0].mxu0 %v794
      %v937 = vpop.f32.mrb[0].mxu0
      %v938 = vadd.f32 0.0, %v937
      %v939 = vpop.f32.mrb[0].mxu0
      %v940 = vadd.f32 0.0, %v939
      %941 = vmatprep.mubr.f32.mxu0 0.0
      %942 = vmatmul.mubr.f32.gmra.mrb[0].mxu0 %v797
      %v943 = vpop.f32.mrb[0].mxu0
      %v944 = vadd.f32 0.0, %v943
      %v945 = vpop.f32.mrb[0].mxu0
      %v946 = vadd.f32 0.0, %v945
      %947 = vmatprep.mubr.f32.mxu0 0.0
      %948 = vmatmul.mubr.f32.gmra.mrb[0].mxu0 %v800
      %v949 = vpop.f32.mrb[0].mxu0
      %v950 = vadd.f32 0.0, %v949
      %v951 = vpop.f32.mrb[0].mxu0
      %v952 = vadd.f32 0.0, %v951
      %953 = vmatprep.mubr.f32.mxu0 0.0
      %954 = vmatmul.mubr.f32.gmra.mrb[0].mxu0 %v803
      %v955 = vpop.f32.mrb[0].mxu0
      %v956 = vadd.f32 0.0, %v955
      %v957 = vpop.f32.mrb[0].mxu0
      %v958 = vadd.f32 0.0, %v957
      %959 = vmatprep.mubr.f32.mxu0 0.0
      %960 = vmatmul.mubr.f32.gmra.mrb[0].mxu0 %v806
      %v961 = vpop.f32.mrb[0].mxu0
      %v962 = vadd.f32 0.0, %v961
      %v963 = vpop.f32.mrb[0].mxu0
      %v964 = vadd.f32 0.0, %v963
      %965 = vmatprep.mubr.f32.mxu0 0.0
      %966 = vmatmul.mubr.f32.gmra.mrb[0].mxu0 %v809
      %v967 = vpop.f32.mrb[0].mxu0
      %v968 = vadd.f32 0.0, %v967
      %v969 = vpop.f32.mrb[0].mxu0
      %v970 = vadd.f32 0.0, %v969
      %971 = vdwg.mxu0
      %972 = vmatprep.subr.mxu0 %v447
      %973 = vmatpush1.msra.mxu0 %v446
      %974 = vmatprep.subr.mxu0 %v451
      %975 = vmatpush1.msra.mxu0 %v450
      %976 = vmatprep.subr.mxu0 0.0
      %977 = vmatpush1.msra.mxu0 0.0
      %978 = vmatprep.subr.mxu0 0.0
      %979 = vmatpush1.msra.mxu0 0.0
      %980 = vmatprep.subr.mxu0 0.0
      %981 = vmatpush1.msra.mxu0 0.0
      %982 = vmatprep.subr.mxu0 0.0
      %983 = vmatpush1.msra.mxu0 0.0
      %984 = vmatprep.subr.mxu0 0.0
      %985 = vmatpush1.msra.mxu0 0.0
      %986 = vmatprep.subr.mxu0 0.0
      %987 = vmatpush1.msra.mxu0 0.0
      %988 = vmatprep.subr.mxu0 0.0
      %989 = vmatpush1.msra.mxu0 0.0
      %990 = vmatprep.subr.mxu0 0.0
      %991 = vmatpush1.msra.mxu0 0.0
      %992 = vmatprep.subr.mxu0 0.0
      %993 = vmatpush1.msra.mxu0 0.0
      %994 = vmatprep.subr.mxu0 0.0
      %995 = vmatpush1.msra.mxu0 0.0
      %996 = vmatprep.subr.mxu0 0.0
      %997 = vmatpush1.msra.mxu0 0.0
      %998 = vmatprep.subr.mxu0 0.0
      %999 = vmatpush1.msra.mxu0 0.0
      %1000 = vmatprep.subr.mxu0 0.0
      %1001 = vmatpush1.msra.mxu0 0.0
      %1002 = vmatprep.subr.mxu0 0.0
      %1003 = vmatpush1.msra.mxu0 0.0
      %1004 = vmatprep.subr.mxu0 0.0
      %1005 = vmatpush1.msra.mxu0 0.0
      %1006 = vmatprep.subr.mxu0 0.0
      %1007 = vmatpush1.msra.mxu0 0.0
      %1008 = vmatprep.subr.mxu0 0.0
      %1009 = vmatpush1.msra.mxu0 0.0
      %1010 = vmatprep.subr.mxu0 0.0
      %1011 = vmatpush1.msra.mxu0 0.0
      %1012 = vmatprep.subr.mxu0 0.0
      %1013 = vmatpush1.msra.mxu0 0.0
      %1014 = vmatprep.subr.mxu0 0.0
      %1015 = vmatpush1.msra.mxu0 0.0
      %1016 = vmatprep.subr.mxu0 0.0
      %1017 = vmatpush1.msra.mxu0 0.0
      %1018 = vmatprep.subr.mxu0 0.0
      %1019 = vmatpush1.msra.mxu0 0.0
      %1020 = vmatprep.subr.mxu0 0.0
      %1021 = vmatpush1.msra.mxu0 0.0
      %1022 = vmatprep.subr.mxu0 0.0
      %1023 = vmatpush1.msra.mxu0 0.0
      %1024 = vmatprep.subr.mxu0 0.0
      %1025 = vmatpush1.msra.mxu0 0.0
      %1026 = vmatprep.subr.mxu0 0.0
      %1027 = vmatpush1.msra.mxu0 0.0
      %1028 = vmatprep.subr.mxu0 0.0
      %1029 = vmatpush1.msra.mxu0 0.0
      %1030 = vmatprep.subr.mxu0 0.0
      %1031 = vmatpush1.msra.mxu0 0.0
      %1032 = vmatprep.subr.mxu0 0.0
      %1033 = vmatpush1.msra.mxu0 0.0
      %1034 = vmatprep.subr.mxu0 0.0
      %1035 = vmatpush1.msra.mxu0 0.0
      %1036 = vmatprep.mubr.f32.mxu0 0.0
      %1037 = vmatmul.mubr.f32.gmra.mrb[0].mxu0 %v764
      %v1038 = vpop.f32.mrb[0].mxu0
      %v1039 = vadd.f32 0.0, %v1038
      %v1040 = vpop.f32.mrb[0].mxu0
      %v1041 = vadd.f32 0.0, %v1040
      %1042 = vmatprep.mubr.f32.mxu0 0.0
      %1043 = vmatmul.mubr.f32.gmra.mrb[0].mxu0 %v767
      %v1044 = vpop.f32.mrb[0].mxu0
      %v1045 = vadd.f32 0.0, %v1044
      %v1046 = vpop.f32.mrb[0].mxu0
      %v1047 = vadd.f32 0.0, %v1046
      %1048 = vmatprep.mubr.f32.mxu0 0.0
      %1049 = vmatmul.mubr.f32.gmra.mrb[0].mxu0 %v770
      %v1050 = vpop.f32.mrb[0].mxu0
      %v1051 = vadd.f32 0.0, %v1050
      %v1052 = vpop.f32.mrb[0].mxu0
      %v1053 = vadd.f32 0.0, %v1052
      %1054 = vmatprep.mubr.f32.mxu0 0.0
      %1055 = vmatmul.mubr.f32.gmra.mrb[0].mxu0 %v773
      %v1056 = vpop.f32.mrb[0].mxu0
      %v1057 = vadd.f32 0.0, %v1056
      %v1058 = vpop.f32.mrb[0].mxu0
      %v1059 = vadd.f32 0.0, %v1058
      %1060 = vmatprep.mubr.f32.mxu0 0.0
      %1061 = vmatmul.mubr.f32.gmra.mrb[0].mxu0 %v776
      %v1062 = vpop.f32.mrb[0].mxu0
      %v1063 = vadd.f32 0.0, %v1062
      %v1064 = vpop.f32.mrb[0].mxu0
      %v1065 = vadd.f32 0.0, %v1064
      %1066 = vmatprep.mubr.f32.mxu0 0.0
      %1067 = vmatmul.mubr.f32.gmra.mrb[0].mxu0 %v779
      %v1068 = vpop.f32.mrb[0].mxu0
      %v1069 = vadd.f32 0.0, %v1068
      %v1070 = vpop.f32.mrb[0].mxu0
      %v1071 = vadd.f32 0.0, %v1070
      %1072 = vmatprep.mubr.f32.mxu0 0.0
      %1073 = vmatmul.mubr.f32.gmra.mrb[0].mxu0 %v782
      %v1074 = vpop.f32.mrb[0].mxu0
      %v1075 = vadd.f32 0.0, %v1074
      %v1076 = vpop.f32.mrb[0].mxu0
      %v1077 = vadd.f32 0.0, %v1076
      %1078 = vmatprep.mubr.f32.mxu0 0.0
      %1079 = vmatmul.mubr.f32.gmra.mrb[0].mxu0 %v785
      %v1080 = vpop.f32.mrb[0].mxu0
      %v1081 = vadd.f32 0.0, %v1080
      %v1082 = vpop.f32.mrb[0].mxu0
      %v1083 = vadd.f32 0.0, %v1082
      %1084 = vmatprep.mubr.f32.mxu0 0.0
      %1085 = vmatmul.mubr.f32.gmra.mrb[0].mxu0 %v788
      %v1086 = vpop.f32.mrb[0].mxu0
      %v1087 = vadd.f32 0.0, %v1086
      %v1088 = vpop.f32.mrb[0].mxu0
      %v1089 = vadd.f32 0.0, %v1088
      %1090 = vmatprep.mubr.f32.mxu0 0.0
      %1091 = vmatmul.mubr.f32.gmra.mrb[0].mxu0 %v791
      %v1092 = vpop.f32.mrb[0].mxu0
      %v1093 = vadd.f32 0.0, %v1092
      %v1094 = vpop.f32.mrb[0].mxu0
      %v1095 = vadd.f32 0.0, %v1094
      %1096 = vmatprep.mubr.f32.mxu0 0.0
      %1097 = vmatmul.mubr.f32.gmra.mrb[0].mxu0 %v794
      %v1098 = vpop.f32.mrb[0].mxu0
      %v1099 = vadd.f32 0.0, %v1098
      %v1100 = vpop.f32.mrb[0].mxu0
      %v1101 = vadd.f32 0.0, %v1100
      %1102 = vmatprep.mubr.f32.mxu0 0.0
      %1103 = vmatmul.mubr.f32.gmra.mrb[0].mxu0 %v797
      %v1104 = vpop.f32.mrb[0].mxu0
      %v1105 = vadd.f32 0.0, %v1104
      %v1106 = vpop.f32.mrb[0].mxu0
      %v1107 = vadd.f32 0.0, %v1106
      %1108 = vmatprep.mubr.f32.mxu0 0.0
      %1109 = vmatmul.mubr.f32.gmra.mrb[0].mxu0 %v800
      %v1110 = vpop.f32.mrb[0].mxu0
      %v1111 = vadd.f32 0.0, %v1110
      %v1112 = vpop.f32.mrb[0].mxu0
      %v1113 = vadd.f32 0.0, %v1112
      %1114 = vmatprep.mubr.f32.mxu0 0.0
      %1115 = vmatmul.mubr.f32.gmra.mrb[0].mxu0 %v803
      %v1116 = vpop.f32.mrb[0].mxu0
      %v1117 = vadd.f32 0.0, %v1116
      %v1118 = vpop.f32.mrb[0].mxu0
      %v1119 = vadd.f32 0.0, %v1118
      %1120 = vmatprep.mubr.f32.mxu0 0.0
      %1121 = vmatmul.mubr.f32.gmra.mrb[0].mxu0 %v806
      %v1122 = vpop.f32.mrb[0].mxu0
      %v1123 = vadd.f32 0.0, %v1122
      %v1124 = vpop.f32.mrb[0].mxu0
      %v1125 = vadd.f32 0.0, %v1124
      %1126 = vmatprep.mubr.f32.mxu0 0.0
      %1127 = vmatmul.mubr.f32.gmra.mrb[0].mxu0 %v809
      %v1128 = vpop.f32.mrb[0].mxu0
      %v1129 = vadd.f32 0.0, %v1128
      %v1130 = vpop.f32.mrb[0].mxu0
      %v1131 = vadd.f32 0.0, %v1130
      %1132 = vdwg.mxu0
      %v1134 = vlaneseq
      %v1135 = vshrl.u32 %v1134, 7
      %v1136 = vsub.s32 0, %v1135
      %v1137 = vrot.slane %v740, %v1136
      %v1138 = vlaneseq
      %v1139 = vshrl.u32 %v1138, 7
      %v1140 = vsub.s32 1, %v1139
      %v1141 = vrot.slane %v740, %v1140
      %v1144 = vadd.f32 %v878, %v1137
      %v1145 = vadd.f32 %v880, %v1141
      %v1146 = vadd.f32 %v884, %v1137
      %v1147 = vadd.f32 %v886, %v1141
      %v1148 = vadd.f32 %v890, %v1137
      %v1149 = vadd.f32 %v892, %v1141
      %v1150 = vadd.f32 %v896, %v1137
      %v1151 = vadd.f32 %v898, %v1141
      %v1152 = vadd.f32 %v902, %v1137
      %v1153 = vadd.f32 %v904, %v1141
      %v1154 = vadd.f32 %v908, %v1137
      %v1155 = vadd.f32 %v910, %v1141
      %v1156 = vadd.f32 %v914, %v1137
      %v1157 = vadd.f32 %v916, %v1141
      %v1158 = vadd.f32 %v920, %v1137
      %v1159 = vadd.f32 %v922, %v1141
      %v1160 = vadd.f32 %v926, %v1137
      %v1161 = vadd.f32 %v928, %v1141
      %v1162 = vadd.f32 %v932, %v1137
      %v1163 = vadd.f32 %v934, %v1141
      %v1164 = vadd.f32 %v938, %v1137
      %v1165 = vadd.f32 %v940, %v1141
      %v1166 = vadd.f32 %v944, %v1137
      %v1167 = vadd.f32 %v946, %v1141
      %v1168 = vadd.f32 %v950, %v1137
      %v1169 = vadd.f32 %v952, %v1141
      %v1170 = vadd.f32 %v956, %v1137
      %v1171 = vadd.f32 %v958, %v1141
      %v1172 = vadd.f32 %v962, %v1137
      %v1173 = vadd.f32 %v964, %v1141
      %v1174 = vadd.f32 %v968, %v1137
      %v1175 = vadd.f32 %v970, %v1141
      %v1176 = vmax.f32 %v1144, 0.0
      %v1177 = vmax.f32 %v1145, 0.0
      %v1178 = vmax.f32 %v1146, 0.0
      %v1179 = vmax.f32 %v1147, 0.0
      %v1180 = vmax.f32 %v1148, 0.0
      %v1181 = vmax.f32 %v1149, 0.0
      %v1182 = vmax.f32 %v1150, 0.0
      %v1183 = vmax.f32 %v1151, 0.0
      %v1184 = vmax.f32 %v1152, 0.0
      %v1185 = vmax.f32 %v1153, 0.0
      %v1186 = vmax.f32 %v1154, 0.0
      %v1187 = vmax.f32 %v1155, 0.0
      %v1188 = vmax.f32 %v1156, 0.0
      %v1189 = vmax.f32 %v1157, 0.0
      %v1190 = vmax.f32 %v1158, 0.0
      %v1191 = vmax.f32 %v1159, 0.0
      %v1192 = vmax.f32 %v1160, 0.0
      %v1193 = vmax.f32 %v1161, 0.0
      %v1194 = vmax.f32 %v1162, 0.0
      %v1195 = vmax.f32 %v1163, 0.0
      %v1196 = vmax.f32 %v1164, 0.0
      %v1197 = vmax.f32 %v1165, 0.0
      %v1198 = vmax.f32 %v1166, 0.0
      %v1199 = vmax.f32 %v1167, 0.0
      %v1200 = vmax.f32 %v1168, 0.0
      %v1201 = vmax.f32 %v1169, 0.0
      %v1202 = vmax.f32 %v1170, 0.0
      %v1203 = vmax.f32 %v1171, 0.0
      %v1204 = vmax.f32 %v1172, 0.0
      %v1205 = vmax.f32 %v1173, 0.0
      %v1206 = vmax.f32 %v1174, 0.0
      %v1207 = vmax.f32 %v1175, 0.0
      %v1209 = vlaneseq
      %v1210 = vshrl.u32 %v1209, 7
      %v1211 = vsub.s32 0, %v1210
      %v1212 = vrot.slane %v741, %v1211
      %v1213 = vlaneseq
      %v1214 = vshrl.u32 %v1213, 7
      %v1215 = vsub.s32 1, %v1214
      %v1216 = vrot.slane %v741, %v1215
      %1219 = vmatprep.subr.mxu0 %v453
      %1220 = vmatpush1.msra.mxu0 %v452
      %1221 = vmatprep.subr.mxu0 %v455
      %1222 = vmatpush1.msra.mxu0 %v454
      %1223 = vmatprep.subr.mxu0 %v457
      %1224 = vmatpush1.msra.mxu0 %v456
      %1225 = vmatprep.subr.mxu0 %v459
      %1226 = vmatpush1.msra.mxu0 %v458
      %1227 = vmatprep.subr.mxu0 %v461
      %1228 = vmatpush1.msra.mxu0 %v460
      %1229 = vmatprep.subr.mxu0 %v463
      %1230 = vmatpush1.msra.mxu0 %v462
      %1231 = vmatprep.subr.mxu0 %v465
      %1232 = vmatpush1.msra.mxu0 %v464
      %1233 = vmatprep.subr.mxu0 %v467
      %1234 = vmatpush1.msra.mxu0 %v466
      %1235 = vmatprep.subr.mxu0 %v469
      %1236 = vmatpush1.msra.mxu0 %v468
      %1237 = vmatprep.subr.mxu0 %v471
      %1238 = vmatpush1.msra.mxu0 %v470
      %1239 = vmatprep.subr.mxu0 %v473
      %1240 = vmatpush1.msra.mxu0 %v472
      %1241 = vmatprep.subr.mxu0 %v475
      %1242 = vmatpush1.msra.mxu0 %v474
      %1243 = vmatprep.subr.mxu0 %v477
      %1244 = vmatpush1.msra.mxu0 %v476
      %1245 = vmatprep.subr.mxu0 %v479
      %1246 = vmatpush1.msra.mxu0 %v478
      %1247 = vmatprep.subr.mxu0 %v481
      %1248 = vmatpush1.msra.mxu0 %v480
      %1249 = vmatprep.subr.mxu0 %v483
      %1250 = vmatpush1.msra.mxu0 %v482
      %1251 = vmatprep.subr.mxu0 %v485
      %1252 = vmatpush1.msra.mxu0 %v484
      %1253 = vmatprep.subr.mxu0 %v487
      %1254 = vmatpush1.msra.mxu0 %v486
      %1255 = vmatprep.subr.mxu0 %v489
      %1256 = vmatpush1.msra.mxu0 %v488
      %1257 = vmatprep.subr.mxu0 %v491
      %1258 = vmatpush1.msra.mxu0 %v490
      %1259 = vmatprep.subr.mxu0 %v493
      %1260 = vmatpush1.msra.mxu0 %v492
      %1261 = vmatprep.subr.mxu0 %v495
      %1262 = vmatpush1.msra.mxu0 %v494
      %1263 = vmatprep.subr.mxu0 %v497
      %1264 = vmatpush1.msra.mxu0 %v496
      %1265 = vmatprep.subr.mxu0 %v499
      %1266 = vmatpush1.msra.mxu0 %v498
      %1267 = vmatprep.subr.mxu0 %v501
      %1268 = vmatpush1.msra.mxu0 %v500
      %1269 = vmatprep.subr.mxu0 %v503
      %1270 = vmatpush1.msra.mxu0 %v502
      %1271 = vmatprep.subr.mxu0 %v505
      %1272 = vmatpush1.msra.mxu0 %v504
      %1273 = vmatprep.subr.mxu0 %v507
      %1274 = vmatpush1.msra.mxu0 %v506
      %1275 = vmatprep.subr.mxu0 %v509
      %1276 = vmatpush1.msra.mxu0 %v508
      %1277 = vmatprep.subr.mxu0 %v511
      %1278 = vmatpush1.msra.mxu0 %v510
      %1279 = vmatprep.subr.mxu0 %v513
      %1280 = vmatpush1.msra.mxu0 %v512
      %1281 = vmatprep.subr.mxu0 %v515
      %1282 = vmatpush1.msra.mxu0 %v514
      %1283 = vmatprep.mubr.f32.mxu0 %v1177
      %1284 = vmatmul.mubr.f32.gmra.mrb[0].mxu0 %v1176
      %v1285 = vpop.f32.mrb[0].mxu0
      %v1286 = vadd.f32 %v1212, %v1285
      %v1287 = vpop.f32.mrb[0].mxu0
      %v1288 = vadd.f32 %v1216, %v1287
      %1289 = vmatprep.mubr.f32.mxu0 %v1179
      %1290 = vmatmul.mubr.f32.gmra.mrb[0].mxu0 %v1178
      %v1291 = vpop.f32.mrb[0].mxu0
      %v1292 = vadd.f32 %v1212, %v1291
      %v1293 = vpop.f32.mrb[0].mxu0
      %v1294 = vadd.f32 %v1216, %v1293
      %1295 = vmatprep.mubr.f32.mxu0 %v1181
      %1296 = vmatmul.mubr.f32.gmra.mrb[0].mxu0 %v1180
      %v1297 = vpop.f32.mrb[0].mxu0
      %v1298 = vadd.f32 %v1212, %v1297
      %v1299 = vpop.f32.mrb[0].mxu0
      %v1300 = vadd.f32 %v1216, %v1299
      %1301 = vmatprep.mubr.f32.mxu0 %v1183
      %1302 = vmatmul.mubr.f32.gmra.mrb[0].mxu0 %v1182
      %v1303 = vpop.f32.mrb[0].mxu0
      %v1304 = vadd.f32 %v1212, %v1303
      %v1305 = vpop.f32.mrb[0].mxu0
      %v1306 = vadd.f32 %v1216, %v1305
      %1307 = vmatprep.mubr.f32.mxu0 %v1185
      %1308 = vmatmul.mubr.f32.gmra.mrb[0].mxu0 %v1184
      %v1309 = vpop.f32.mrb[0].mxu0
      %v1310 = vadd.f32 %v1212, %v1309
      %v1311 = vpop.f32.mrb[0].mxu0
      %v1312 = vadd.f32 %v1216, %v1311
      %1313 = vmatprep.mubr.f32.mxu0 %v1187
      %1314 = vmatmul.mubr.f32.gmra.mrb[0].mxu0 %v1186
      %v1315 = vpop.f32.mrb[0].mxu0
      %v1316 = vadd.f32 %v1212, %v1315
      %v1317 = vpop.f32.mrb[0].mxu0
      %v1318 = vadd.f32 %v1216, %v1317
      %1319 = vmatprep.mubr.f32.mxu0 %v1189
      %1320 = vmatmul.mubr.f32.gmra.mrb[0].mxu0 %v1188
      %v1321 = vpop.f32.mrb[0].mxu0
      %v1322 = vadd.f32 %v1212, %v1321
      %v1323 = vpop.f32.mrb[0].mxu0
      %v1324 = vadd.f32 %v1216, %v1323
      %1325 = vmatprep.mubr.f32.mxu0 %v1191
      %1326 = vmatmul.mubr.f32.gmra.mrb[0].mxu0 %v1190
      %v1327 = vpop.f32.mrb[0].mxu0
      %v1328 = vadd.f32 %v1212, %v1327
      %v1329 = vpop.f32.mrb[0].mxu0
      %v1330 = vadd.f32 %v1216, %v1329
      %1331 = vmatprep.mubr.f32.mxu0 %v1193
      %1332 = vmatmul.mubr.f32.gmra.mrb[0].mxu0 %v1192
      %v1333 = vpop.f32.mrb[0].mxu0
      %v1334 = vadd.f32 %v1212, %v1333
      %v1335 = vpop.f32.mrb[0].mxu0
      %v1336 = vadd.f32 %v1216, %v1335
      %1337 = vmatprep.mubr.f32.mxu0 %v1195
      %1338 = vmatmul.mubr.f32.gmra.mrb[0].mxu0 %v1194
      %v1339 = vpop.f32.mrb[0].mxu0
      %v1340 = vadd.f32 %v1212, %v1339
      %v1341 = vpop.f32.mrb[0].mxu0
      %v1342 = vadd.f32 %v1216, %v1341
      %1343 = vmatprep.mubr.f32.mxu0 %v1197
      %1344 = vmatmul.mubr.f32.gmra.mrb[0].mxu0 %v1196
      %v1345 = vpop.f32.mrb[0].mxu0
      %v1346 = vadd.f32 %v1212, %v1345
      %v1347 = vpop.f32.mrb[0].mxu0
      %v1348 = vadd.f32 %v1216, %v1347
      %1349 = vmatprep.mubr.f32.mxu0 %v1199
      %1350 = vmatmul.mubr.f32.gmra.mrb[0].mxu0 %v1198
      %v1351 = vpop.f32.mrb[0].mxu0
      %v1352 = vadd.f32 %v1212, %v1351
      %v1353 = vpop.f32.mrb[0].mxu0
      %v1354 = vadd.f32 %v1216, %v1353
      %1355 = vmatprep.mubr.f32.mxu0 %v1201
      %1356 = vmatmul.mubr.f32.gmra.mrb[0].mxu0 %v1200
      %v1357 = vpop.f32.mrb[0].mxu0
      %v1358 = vadd.f32 %v1212, %v1357
      %v1359 = vpop.f32.mrb[0].mxu0
      %v1360 = vadd.f32 %v1216, %v1359
      %1361 = vmatprep.mubr.f32.mxu0 %v1203
      %1362 = vmatmul.mubr.f32.gmra.mrb[0].mxu0 %v1202
      %v1363 = vpop.f32.mrb[0].mxu0
      %v1364 = vadd.f32 %v1212, %v1363
      %v1365 = vpop.f32.mrb[0].mxu0
      %v1366 = vadd.f32 %v1216, %v1365
      %1367 = vmatprep.mubr.f32.mxu0 %v1205
      %1368 = vmatmul.mubr.f32.gmra.mrb[0].mxu0 %v1204
      %v1369 = vpop.f32.mrb[0].mxu0
      %v1370 = vadd.f32 %v1212, %v1369
      %v1371 = vpop.f32.mrb[0].mxu0
      %v1372 = vadd.f32 %v1216, %v1371
      %1373 = vmatprep.mubr.f32.mxu0 %v1207
      %1374 = vmatmul.mubr.f32.gmra.mrb[0].mxu0 %v1206
      %v1375 = vpop.f32.mrb[0].mxu0
      %v1376 = vadd.f32 %v1212, %v1375
      %v1377 = vpop.f32.mrb[0].mxu0
      %v1378 = vadd.f32 %v1216, %v1377
      %1379 = vdwg.mxu0
      %v1380 = vmax.f32 %v1286, 0.0
      %v1381 = vmax.f32 %v1288, 0.0
      %v1382 = vmax.f32 %v1292, 0.0
      %v1383 = vmax.f32 %v1294, 0.0
      %v1384 = vmax.f32 %v1298, 0.0
      %v1385 = vmax.f32 %v1300, 0.0
      %v1386 = vmax.f32 %v1304, 0.0
      %v1387 = vmax.f32 %v1306, 0.0
      %v1388 = vmax.f32 %v1310, 0.0
      %v1389 = vmax.f32 %v1312, 0.0
      %v1390 = vmax.f32 %v1316, 0.0
      %v1391 = vmax.f32 %v1318, 0.0
      %v1392 = vmax.f32 %v1322, 0.0
      %v1393 = vmax.f32 %v1324, 0.0
      %v1394 = vmax.f32 %v1328, 0.0
      %v1395 = vmax.f32 %v1330, 0.0
      %v1396 = vmax.f32 %v1334, 0.0
      %v1397 = vmax.f32 %v1336, 0.0
      %v1398 = vmax.f32 %v1340, 0.0
      %v1399 = vmax.f32 %v1342, 0.0
      %v1400 = vmax.f32 %v1346, 0.0
      %v1401 = vmax.f32 %v1348, 0.0
      %v1402 = vmax.f32 %v1352, 0.0
      %v1403 = vmax.f32 %v1354, 0.0
      %v1404 = vmax.f32 %v1358, 0.0
      %v1405 = vmax.f32 %v1360, 0.0
      %v1406 = vmax.f32 %v1364, 0.0
      %v1407 = vmax.f32 %v1366, 0.0
      %v1408 = vmax.f32 %v1370, 0.0
      %v1409 = vmax.f32 %v1372, 0.0
      %v1410 = vmax.f32 %v1376, 0.0
      %v1411 = vmax.f32 %v1378, 0.0
      %v1413 = vlaneseq
      %v1414 = vshrl.u32 %v1413, 7
      %v1415 = vsub.s32 0, %v1414
      %v1416 = vrot.slane %v742, %v1415
      %v1417 = vlaneseq
      %v1418 = vshrl.u32 %v1417, 7
      %v1419 = vsub.s32 1, %v1418
      %v1420 = vrot.slane %v742, %v1419
      %1423 = vmatprep.subr.mxu0 %v517
      %1424 = vmatpush1.msra.mxu0 %v516
      %1425 = vmatprep.subr.mxu0 %v519
      %1426 = vmatpush1.msra.mxu0 %v518
      %1427 = vmatprep.subr.mxu0 %v521
      %1428 = vmatpush1.msra.mxu0 %v520
      %1429 = vmatprep.subr.mxu0 %v523
      %1430 = vmatpush1.msra.mxu0 %v522
      %1431 = vmatprep.subr.mxu0 %v525
      %1432 = vmatpush1.msra.mxu0 %v524
      %1433 = vmatprep.subr.mxu0 %v527
      %1434 = vmatpush1.msra.mxu0 %v526
      %1435 = vmatprep.subr.mxu0 %v529
      %1436 = vmatpush1.msra.mxu0 %v528
      %1437 = vmatprep.subr.mxu0 %v531
      %1438 = vmatpush1.msra.mxu0 %v530
      %1439 = vmatprep.subr.mxu0 %v533
      %1440 = vmatpush1.msra.mxu0 %v532
      %1441 = vmatprep.subr.mxu0 %v535
      %1442 = vmatpush1.msra.mxu0 %v534
      %1443 = vmatprep.subr.mxu0 %v537
      %1444 = vmatpush1.msra.mxu0 %v536
      %1445 = vmatprep.subr.mxu0 %v539
      %1446 = vmatpush1.msra.mxu0 %v538
      %1447 = vmatprep.subr.mxu0 %v541
      %1448 = vmatpush1.msra.mxu0 %v540
      %1449 = vmatprep.subr.mxu0 %v543
      %1450 = vmatpush1.msra.mxu0 %v542
      %1451 = vmatprep.subr.mxu0 %v545
      %1452 = vmatpush1.msra.mxu0 %v544
      %1453 = vmatprep.subr.mxu0 %v547
      %1454 = vmatpush1.msra.mxu0 %v546
      %1455 = vmatprep.subr.mxu0 %v549
      %1456 = vmatpush1.msra.mxu0 %v548
      %1457 = vmatprep.subr.mxu0 %v551
      %1458 = vmatpush1.msra.mxu0 %v550
      %1459 = vmatprep.subr.mxu0 %v553
      %1460 = vmatpush1.msra.mxu0 %v552
      %1461 = vmatprep.subr.mxu0 %v555
      %1462 = vmatpush1.msra.mxu0 %v554
      %1463 = vmatprep.subr.mxu0 %v557
      %1464 = vmatpush1.msra.mxu0 %v556
      %1465 = vmatprep.subr.mxu0 %v559
      %1466 = vmatpush1.msra.mxu0 %v558
      %1467 = vmatprep.subr.mxu0 %v561
      %1468 = vmatpush1.msra.mxu0 %v560
      %1469 = vmatprep.subr.mxu0 %v563
      %1470 = vmatpush1.msra.mxu0 %v562
      %1471 = vmatprep.subr.mxu0 %v565
      %1472 = vmatpush1.msra.mxu0 %v564
      %1473 = vmatprep.subr.mxu0 %v567
      %1474 = vmatpush1.msra.mxu0 %v566
      %1475 = vmatprep.subr.mxu0 %v569
      %1476 = vmatpush1.msra.mxu0 %v568
      %1477 = vmatprep.subr.mxu0 %v571
      %1478 = vmatpush1.msra.mxu0 %v570
      %1479 = vmatprep.subr.mxu0 %v573
      %1480 = vmatpush1.msra.mxu0 %v572
      %1481 = vmatprep.subr.mxu0 %v575
      %1482 = vmatpush1.msra.mxu0 %v574
      %1483 = vmatprep.subr.mxu0 %v577
      %1484 = vmatpush1.msra.mxu0 %v576
      %1485 = vmatprep.subr.mxu0 %v579
      %1486 = vmatpush1.msra.mxu0 %v578
      %1487 = vmatprep.mubr.f32.mxu0 %v1381
      %1488 = vmatmul.mubr.f32.gmra.mrb[0].mxu0 %v1380
      %v1489 = vpop.f32.mrb[0].mxu0
      %v1490 = vadd.f32 %v1416, %v1489
      %v1491 = vpop.f32.mrb[0].mxu0
      %v1492 = vadd.f32 %v1420, %v1491
      %1493 = vmatprep.mubr.f32.mxu0 %v1383
      %1494 = vmatmul.mubr.f32.gmra.mrb[0].mxu0 %v1382
      %v1495 = vpop.f32.mrb[0].mxu0
      %v1496 = vadd.f32 %v1416, %v1495
      %v1497 = vpop.f32.mrb[0].mxu0
      %v1498 = vadd.f32 %v1420, %v1497
      %1499 = vmatprep.mubr.f32.mxu0 %v1385
      %1500 = vmatmul.mubr.f32.gmra.mrb[0].mxu0 %v1384
      %v1501 = vpop.f32.mrb[0].mxu0
      %v1502 = vadd.f32 %v1416, %v1501
      %v1503 = vpop.f32.mrb[0].mxu0
      %v1504 = vadd.f32 %v1420, %v1503
      %1505 = vmatprep.mubr.f32.mxu0 %v1387
      %1506 = vmatmul.mubr.f32.gmra.mrb[0].mxu0 %v1386
      %v1507 = vpop.f32.mrb[0].mxu0
      %v1508 = vadd.f32 %v1416, %v1507
      %v1509 = vpop.f32.mrb[0].mxu0
      %v1510 = vadd.f32 %v1420, %v1509
      %1511 = vmatprep.mubr.f32.mxu0 %v1389
      %1512 = vmatmul.mubr.f32.gmra.mrb[0].mxu0 %v1388
      %v1513 = vpop.f32.mrb[0].mxu0
      %v1514 = vadd.f32 %v1416, %v1513
      %v1515 = vpop.f32.mrb[0].mxu0
      %v1516 = vadd.f32 %v1420, %v1515
      %1517 = vmatprep.mubr.f32.mxu0 %v1391
      %1518 = vmatmul.mubr.f32.gmra.mrb[0].mxu0 %v1390
      %v1519 = vpop.f32.mrb[0].mxu0
      %v1520 = vadd.f32 %v1416, %v1519
      %v1521 = vpop.f32.mrb[0].mxu0
      %v1522 = vadd.f32 %v1420, %v1521
      %1523 = vmatprep.mubr.f32.mxu0 %v1393
      %1524 = vmatmul.mubr.f32.gmra.mrb[0].mxu0 %v1392
      %v1525 = vpop.f32.mrb[0].mxu0
      %v1526 = vadd.f32 %v1416, %v1525
      %v1527 = vpop.f32.mrb[0].mxu0
      %v1528 = vadd.f32 %v1420, %v1527
      %1529 = vmatprep.mubr.f32.mxu0 %v1395
      %1530 = vmatmul.mubr.f32.gmra.mrb[0].mxu0 %v1394
      %v1531 = vpop.f32.mrb[0].mxu0
      %v1532 = vadd.f32 %v1416, %v1531
      %v1533 = vpop.f32.mrb[0].mxu0
      %v1534 = vadd.f32 %v1420, %v1533
      %1535 = vmatprep.mubr.f32.mxu0 %v1397
      %1536 = vmatmul.mubr.f32.gmra.mrb[0].mxu0 %v1396
      %v1537 = vpop.f32.mrb[0].mxu0
      %v1538 = vadd.f32 %v1416, %v1537
      %v1539 = vpop.f32.mrb[0].mxu0
      %v1540 = vadd.f32 %v1420, %v1539
      %1541 = vmatprep.mubr.f32.mxu0 %v1399
      %1542 = vmatmul.mubr.f32.gmra.mrb[0].mxu0 %v1398
      %v1543 = vpop.f32.mrb[0].mxu0
      %v1544 = vadd.f32 %v1416, %v1543
      %v1545 = vpop.f32.mrb[0].mxu0
      %v1546 = vadd.f32 %v1420, %v1545
      %1547 = vmatprep.mubr.f32.mxu0 %v1401
      %1548 = vmatmul.mubr.f32.gmra.mrb[0].mxu0 %v1400
      %v1549 = vpop.f32.mrb[0].mxu0
      %v1550 = vadd.f32 %v1416, %v1549
      %v1551 = vpop.f32.mrb[0].mxu0
      %v1552 = vadd.f32 %v1420, %v1551
      %1553 = vmatprep.mubr.f32.mxu0 %v1403
      %1554 = vmatmul.mubr.f32.gmra.mrb[0].mxu0 %v1402
      %v1555 = vpop.f32.mrb[0].mxu0
      %v1556 = vadd.f32 %v1416, %v1555
      %v1557 = vpop.f32.mrb[0].mxu0
      %v1558 = vadd.f32 %v1420, %v1557
      %1559 = vmatprep.mubr.f32.mxu0 %v1405
      %1560 = vmatmul.mubr.f32.gmra.mrb[0].mxu0 %v1404
      %v1561 = vpop.f32.mrb[0].mxu0
      %v1562 = vadd.f32 %v1416, %v1561
      %v1563 = vpop.f32.mrb[0].mxu0
      %v1564 = vadd.f32 %v1420, %v1563
      %1565 = vmatprep.mubr.f32.mxu0 %v1407
      %1566 = vmatmul.mubr.f32.gmra.mrb[0].mxu0 %v1406
      %v1567 = vpop.f32.mrb[0].mxu0
      %v1568 = vadd.f32 %v1416, %v1567
      %v1569 = vpop.f32.mrb[0].mxu0
      %v1570 = vadd.f32 %v1420, %v1569
      %1571 = vmatprep.mubr.f32.mxu0 %v1409
      %1572 = vmatmul.mubr.f32.gmra.mrb[0].mxu0 %v1408
      %v1573 = vpop.f32.mrb[0].mxu0
      %v1574 = vadd.f32 %v1416, %v1573
      %v1575 = vpop.f32.mrb[0].mxu0
      %v1576 = vadd.f32 %v1420, %v1575
      %1577 = vmatprep.mubr.f32.mxu0 %v1411
      %1578 = vmatmul.mubr.f32.gmra.mrb[0].mxu0 %v1410
      %v1579 = vpop.f32.mrb[0].mxu0
      %v1580 = vadd.f32 %v1416, %v1579
      %v1581 = vpop.f32.mrb[0].mxu0
      %v1582 = vadd.f32 %v1420, %v1581
      %1583 = vdwg.mxu0
      %v1584 = vmax.f32 %v1490, 0.0
      %v1585 = vmax.f32 %v1492, 0.0
      %v1586 = vmax.f32 %v1496, 0.0
      %v1587 = vmax.f32 %v1498, 0.0
      %v1588 = vmax.f32 %v1502, 0.0
      %v1589 = vmax.f32 %v1504, 0.0
      %v1590 = vmax.f32 %v1508, 0.0
      %v1591 = vmax.f32 %v1510, 0.0
      %v1592 = vmax.f32 %v1514, 0.0
      %v1593 = vmax.f32 %v1516, 0.0
      %v1594 = vmax.f32 %v1520, 0.0
      %v1595 = vmax.f32 %v1522, 0.0
      %v1596 = vmax.f32 %v1526, 0.0
      %v1597 = vmax.f32 %v1528, 0.0
      %v1598 = vmax.f32 %v1532, 0.0
      %v1599 = vmax.f32 %v1534, 0.0
      %v1600 = vmax.f32 %v1538, 0.0
      %v1601 = vmax.f32 %v1540, 0.0
      %v1602 = vmax.f32 %v1544, 0.0
      %v1603 = vmax.f32 %v1546, 0.0
      %v1604 = vmax.f32 %v1550, 0.0
      %v1605 = vmax.f32 %v1552, 0.0
      %v1606 = vmax.f32 %v1556, 0.0
      %v1607 = vmax.f32 %v1558, 0.0
      %v1608 = vmax.f32 %v1562, 0.0
      %v1609 = vmax.f32 %v1564, 0.0
      %v1610 = vmax.f32 %v1568, 0.0
      %v1611 = vmax.f32 %v1570, 0.0
      %v1612 = vmax.f32 %v1574, 0.0
      %v1613 = vmax.f32 %v1576, 0.0
      %v1614 = vmax.f32 %v1580, 0.0
      %v1615 = vmax.f32 %v1582, 0.0
      %1616 = vmatprep.subr.mxu0 %v581
      %1617 = vmatpush1.msra.mxu0 %v580
      %1618 = vmatprep.subr.mxu0 %v583
      %1619 = vmatpush1.msra.mxu0 %v582
      %1620 = vmatprep.subr.mxu0 %v585
      %1621 = vmatpush1.msra.mxu0 %v584
      %1622 = vmatprep.subr.mxu0 %v587
      %1623 = vmatpush1.msra.mxu0 %v586
      %1624 = vmatprep.subr.mxu0 %v589
      %1625 = vmatpush1.msra.mxu0 %v588
      %1626 = vmatprep.subr.mxu0 %v591
      %1627 = vmatpush1.msra.mxu0 %v590
      %1628 = vmatprep.subr.mxu0 %v593
      %1629 = vmatpush1.msra.mxu0 %v592
      %1630 = vmatprep.subr.mxu0 %v595
      %1631 = vmatpush1.msra.mxu0 %v594
      %1632 = vmatprep.subr.mxu0 %v597
      %1633 = vmatpush1.msra.mxu0 %v596
      %1634 = vmatprep.subr.mxu0 %v599
      %1635 = vmatpush1.msra.mxu0 %v598
      %1636 = vmatprep.subr.mxu0 %v601
      %1637 = vmatpush1.msra.mxu0 %v600
      %1638 = vmatprep.subr.mxu0 %v603
      %1639 = vmatpush1.msra.mxu0 %v602
      %1640 = vmatprep.subr.mxu0 %v605
      %1641 = vmatpush1.msra.mxu0 %v604
      %1642 = vmatprep.subr.mxu0 %v607
      %1643 = vmatpush1.msra.mxu0 %v606
      %1644 = vmatprep.subr.mxu0 %v609
      %1645 = vmatpush1.msra.mxu0 %v608
      %1646 = vmatprep.subr.mxu0 %v611
      %1647 = vmatpush1.msra.mxu0 %v610
      %1648 = vmatprep.subr.mxu0 %v613
      %1649 = vmatpush1.msra.mxu0 %v612
      %1650 = vmatprep.subr.mxu0 %v615
      %1651 = vmatpush1.msra.mxu0 %v614
      %1652 = vmatprep.subr.mxu0 %v617
      %1653 = vmatpush1.msra.mxu0 %v616
      %1654 = vmatprep.subr.mxu0 %v619
      %1655 = vmatpush1.msra.mxu0 %v618
      %1656 = vmatprep.subr.mxu0 %v621
      %1657 = vmatpush1.msra.mxu0 %v620
      %1658 = vmatprep.subr.mxu0 %v623
      %1659 = vmatpush1.msra.mxu0 %v622
      %1660 = vmatprep.subr.mxu0 %v625
      %1661 = vmatpush1.msra.mxu0 %v624
      %1662 = vmatprep.subr.mxu0 %v627
      %1663 = vmatpush1.msra.mxu0 %v626
      %1664 = vmatprep.subr.mxu0 %v629
      %1665 = vmatpush1.msra.mxu0 %v628
      %1666 = vmatprep.subr.mxu0 %v631
      %1667 = vmatpush1.msra.mxu0 %v630
      %1668 = vmatprep.subr.mxu0 %v633
      %1669 = vmatpush1.msra.mxu0 %v632
      %1670 = vmatprep.subr.mxu0 %v635
      %1671 = vmatpush1.msra.mxu0 %v634
      %1672 = vmatprep.subr.mxu0 %v637
      %1673 = vmatpush1.msra.mxu0 %v636
      %1674 = vmatprep.subr.mxu0 %v639
      %1675 = vmatpush1.msra.mxu0 %v638
      %1676 = vmatprep.subr.mxu0 %v641
      %1677 = vmatpush1.msra.mxu0 %v640
      %1678 = vmatprep.subr.mxu0 %v643
      %1679 = vmatpush1.msra.mxu0 %v642
      %1680 = vmatprep.mubr.f32.mxu0 %v1585
      %1681 = vmatmul.mubr.f32.gmra.mrb[0].mxu0 %v1584
      %v1682 = vpop.f32.mrb[0].mxu0
      %v1683 = vadd.f32 0.0, %v1682
      %v1684 = vpop.f32.mrb[0].mxu0
      %v1685 = vadd.f32 0.0, %v1684
      %1686 = vmatprep.mubr.f32.mxu0 %v1587
      %1687 = vmatmul.mubr.f32.gmra.mrb[0].mxu0 %v1586
      %v1688 = vpop.f32.mrb[0].mxu0
      %v1689 = vadd.f32 0.0, %v1688
      %v1690 = vpop.f32.mrb[0].mxu0
      %v1691 = vadd.f32 0.0, %v1690
      %1692 = vmatprep.mubr.f32.mxu0 %v1589
      %1693 = vmatmul.mubr.f32.gmra.mrb[0].mxu0 %v1588
      %v1694 = vpop.f32.mrb[0].mxu0
      %v1695 = vadd.f32 0.0, %v1694
      %v1696 = vpop.f32.mrb[0].mxu0
      %v1697 = vadd.f32 0.0, %v1696
      %1698 = vmatprep.mubr.f32.mxu0 %v1591
      %1699 = vmatmul.mubr.f32.gmra.mrb[0].mxu0 %v1590
      %v1700 = vpop.f32.mrb[0].mxu0
      %v1701 = vadd.f32 0.0, %v1700
      %v1702 = vpop.f32.mrb[0].mxu0
      %v1703 = vadd.f32 0.0, %v1702
      %1704 = vmatprep.mubr.f32.mxu0 %v1593
      %1705 = vmatmul.mubr.f32.gmra.mrb[0].mxu0 %v1592
      %v1706 = vpop.f32.mrb[0].mxu0
      %v1707 = vadd.f32 0.0, %v1706
      %v1708 = vpop.f32.mrb[0].mxu0
      %v1709 = vadd.f32 0.0, %v1708
      %1710 = vmatprep.mubr.f32.mxu0 %v1595
      %1711 = vmatmul.mubr.f32.gmra.mrb[0].mxu0 %v1594
      %v1712 = vpop.f32.mrb[0].mxu0
      %v1713 = vadd.f32 0.0, %v1712
      %v1714 = vpop.f32.mrb[0].mxu0
      %v1715 = vadd.f32 0.0, %v1714
      %1716 = vmatprep.mubr.f32.mxu0 %v1597
      %1717 = vmatmul.mubr.f32.gmra.mrb[0].mxu0 %v1596
      %v1718 = vpop.f32.mrb[0].mxu0
      %v1719 = vadd.f32 0.0, %v1718
      %v1720 = vpop.f32.mrb[0].mxu0
      %v1721 = vadd.f32 0.0, %v1720
      %1722 = vmatprep.mubr.f32.mxu0 %v1599
      %1723 = vmatmul.mubr.f32.gmra.mrb[0].mxu0 %v1598
      %v1724 = vpop.f32.mrb[0].mxu0
      %v1725 = vadd.f32 0.0, %v1724
      %v1726 = vpop.f32.mrb[0].mxu0
      %v1727 = vadd.f32 0.0, %v1726
      %1728 = vmatprep.mubr.f32.mxu0 %v1601
      %1729 = vmatmul.mubr.f32.gmra.mrb[0].mxu0 %v1600
      %v1730 = vpop.f32.mrb[0].mxu0
      %v1731 = vadd.f32 0.0, %v1730
      %v1732 = vpop.f32.mrb[0].mxu0
      %v1733 = vadd.f32 0.0, %v1732
      %1734 = vmatprep.mubr.f32.mxu0 %v1603
      %1735 = vmatmul.mubr.f32.gmra.mrb[0].mxu0 %v1602
      %v1736 = vpop.f32.mrb[0].mxu0
      %v1737 = vadd.f32 0.0, %v1736
      %v1738 = vpop.f32.mrb[0].mxu0
      %v1739 = vadd.f32 0.0, %v1738
      %1740 = vmatprep.mubr.f32.mxu0 %v1605
      %1741 = vmatmul.mubr.f32.gmra.mrb[0].mxu0 %v1604
      %v1742 = vpop.f32.mrb[0].mxu0
      %v1743 = vadd.f32 0.0, %v1742
      %v1744 = vpop.f32.mrb[0].mxu0
      %v1745 = vadd.f32 0.0, %v1744
      %1746 = vmatprep.mubr.f32.mxu0 %v1607
      %1747 = vmatmul.mubr.f32.gmra.mrb[0].mxu0 %v1606
      %v1748 = vpop.f32.mrb[0].mxu0
      %v1749 = vadd.f32 0.0, %v1748
      %v1750 = vpop.f32.mrb[0].mxu0
      %v1751 = vadd.f32 0.0, %v1750
      %1752 = vmatprep.mubr.f32.mxu0 %v1609
      %1753 = vmatmul.mubr.f32.gmra.mrb[0].mxu0 %v1608
      %v1754 = vpop.f32.mrb[0].mxu0
      %v1755 = vadd.f32 0.0, %v1754
      %v1756 = vpop.f32.mrb[0].mxu0
      %v1757 = vadd.f32 0.0, %v1756
      %1758 = vmatprep.mubr.f32.mxu0 %v1611
      %1759 = vmatmul.mubr.f32.gmra.mrb[0].mxu0 %v1610
      %v1760 = vpop.f32.mrb[0].mxu0
      %v1761 = vadd.f32 0.0, %v1760
      %v1762 = vpop.f32.mrb[0].mxu0
      %v1763 = vadd.f32 0.0, %v1762
      %1764 = vmatprep.mubr.f32.mxu0 %v1613
      %1765 = vmatmul.mubr.f32.gmra.mrb[0].mxu0 %v1612
      %v1766 = vpop.f32.mrb[0].mxu0
      %v1767 = vadd.f32 0.0, %v1766
      %v1768 = vpop.f32.mrb[0].mxu0
      %v1769 = vadd.f32 0.0, %v1768
      %1770 = vmatprep.mubr.f32.mxu0 %v1615
      %1771 = vmatmul.mubr.f32.gmra.mrb[0].mxu0 %v1614
      %v1772 = vpop.f32.mrb[0].mxu0
      %v1773 = vadd.f32 0.0, %v1772
      %v1774 = vpop.f32.mrb[0].mxu0
      %v1775 = vadd.f32 0.0, %v1774
      %1776 = vdwg.mxu0
      %v1777 = vadd.f32 %v1039, %v1683
      %v1778 = vadd.f32 %v1041, %v1685
      %v1779 = vadd.f32 %v1045, %v1689
      %v1780 = vadd.f32 %v1047, %v1691
      %v1781 = vadd.f32 %v1051, %v1695
      %v1782 = vadd.f32 %v1053, %v1697
      %v1783 = vadd.f32 %v1057, %v1701
      %v1784 = vadd.f32 %v1059, %v1703
      %v1785 = vadd.f32 %v1063, %v1707
      %v1786 = vadd.f32 %v1065, %v1709
      %v1787 = vadd.f32 %v1069, %v1713
      %v1788 = vadd.f32 %v1071, %v1715
      %v1789 = vadd.f32 %v1075, %v1719
      %v1790 = vadd.f32 %v1077, %v1721
      %v1791 = vadd.f32 %v1081, %v1725
      %v1792 = vadd.f32 %v1083, %v1727
      %v1793 = vadd.f32 %v1087, %v1731
      %v1794 = vadd.f32 %v1089, %v1733
      %v1795 = vadd.f32 %v1093, %v1737
      %v1796 = vadd.f32 %v1095, %v1739
      %v1797 = vadd.f32 %v1099, %v1743
      %v1798 = vadd.f32 %v1101, %v1745
      %v1799 = vadd.f32 %v1105, %v1749
      %v1800 = vadd.f32 %v1107, %v1751
      %v1801 = vadd.f32 %v1111, %v1755
      %v1802 = vadd.f32 %v1113, %v1757
      %v1803 = vadd.f32 %v1117, %v1761
      %v1804 = vadd.f32 %v1119, %v1763
      %v1805 = vadd.f32 %v1123, %v1767
      %v1806 = vadd.f32 %v1125, %v1769
      %v1807 = vadd.f32 %v1129, %v1773
      %v1808 = vadd.f32 %v1131, %v1775
      %v1810 = vlaneseq
      %v1811 = vshrl.u32 %v1810, 7
      %v1812 = vsub.s32 0, %v1811
      %v1813 = vrot.slane %v743, %v1812
      %v1814 = vlaneseq
      %v1815 = vshrl.u32 %v1814, 7
      %v1816 = vsub.s32 1, %v1815
      %v1817 = vrot.slane %v743, %v1816
      %v1820 = vadd.f32 %v1777, %v1813
      %v1821 = vadd.f32 %v1778, %v1817
      %v1822 = vadd.f32 %v1779, %v1813
      %v1823 = vadd.f32 %v1780, %v1817
      %v1824 = vadd.f32 %v1781, %v1813
      %v1825 = vadd.f32 %v1782, %v1817
      %v1826 = vadd.f32 %v1783, %v1813
      %v1827 = vadd.f32 %v1784, %v1817
      %v1828 = vadd.f32 %v1785, %v1813
      %v1829 = vadd.f32 %v1786, %v1817
      %v1830 = vadd.f32 %v1787, %v1813
      %v1831 = vadd.f32 %v1788, %v1817
      %v1832 = vadd.f32 %v1789, %v1813
      %v1833 = vadd.f32 %v1790, %v1817
      %v1834 = vadd.f32 %v1791, %v1813
      %v1835 = vadd.f32 %v1792, %v1817
      %v1836 = vadd.f32 %v1793, %v1813
      %v1837 = vadd.f32 %v1794, %v1817
      %v1838 = vadd.f32 %v1795, %v1813
      %v1839 = vadd.f32 %v1796, %v1817
      %v1840 = vadd.f32 %v1797, %v1813
      %v1841 = vadd.f32 %v1798, %v1817
      %v1842 = vadd.f32 %v1799, %v1813
      %v1843 = vadd.f32 %v1800, %v1817
      %v1844 = vadd.f32 %v1801, %v1813
      %v1845 = vadd.f32 %v1802, %v1817
      %v1846 = vadd.f32 %v1803, %v1813
      %v1847 = vadd.f32 %v1804, %v1817
      %v1848 = vadd.f32 %v1805, %v1813
      %v1849 = vadd.f32 %v1806, %v1817
      %v1850 = vadd.f32 %v1807, %v1813
      %v1851 = vadd.f32 %v1808, %v1817
      %v1852 = vmax.f32 %v1820, 0.0
      %v1853 = vmax.f32 %v1821, 0.0
      %v1854 = vmax.f32 %v1822, 0.0
      %v1855 = vmax.f32 %v1823, 0.0
      %v1856 = vmax.f32 %v1824, 0.0
      %v1857 = vmax.f32 %v1825, 0.0
      %v1858 = vmax.f32 %v1826, 0.0
      %v1859 = vmax.f32 %v1827, 0.0
      %v1860 = vmax.f32 %v1828, 0.0
      %v1861 = vmax.f32 %v1829, 0.0
      %v1862 = vmax.f32 %v1830, 0.0
      %v1863 = vmax.f32 %v1831, 0.0
      %v1864 = vmax.f32 %v1832, 0.0
      %v1865 = vmax.f32 %v1833, 0.0
      %v1866 = vmax.f32 %v1834, 0.0
      %v1867 = vmax.f32 %v1835, 0.0
      %v1868 = vmax.f32 %v1836, 0.0
      %v1869 = vmax.f32 %v1837, 0.0
      %v1870 = vmax.f32 %v1838, 0.0
      %v1871 = vmax.f32 %v1839, 0.0
      %v1872 = vmax.f32 %v1840, 0.0
      %v1873 = vmax.f32 %v1841, 0.0
      %v1874 = vmax.f32 %v1842, 0.0
      %v1875 = vmax.f32 %v1843, 0.0
      %v1876 = vmax.f32 %v1844, 0.0
      %v1877 = vmax.f32 %v1845, 0.0
      %v1878 = vmax.f32 %v1846, 0.0
      %v1879 = vmax.f32 %v1847, 0.0
      %v1880 = vmax.f32 %v1848, 0.0
      %v1881 = vmax.f32 %v1849, 0.0
      %v1882 = vmax.f32 %v1850, 0.0
      %v1883 = vmax.f32 %v1851, 0.0
      %v1885 = vlaneseq
      %v1886 = vshrl.u32 %v1885, 7
      %v1887 = vsub.s32 0, %v1886
      %v1888 = vrot.slane %v744, %v1887
      %v1889 = vlaneseq
      %v1890 = vshrl.u32 %v1889, 7
      %v1891 = vsub.s32 1, %v1890
      %v1892 = vrot.slane %v744, %v1891
      %1895 = vmatprep.subr.mxu0 %v645
      %1896 = vmatpush1.msra.mxu0 %v644
      %1897 = vmatprep.subr.mxu0 %v647
      %1898 = vmatpush1.msra.mxu0 %v646
      %1899 = vmatprep.subr.mxu0 %v649
      %1900 = vmatpush1.msra.mxu0 %v648
      %1901 = vmatprep.subr.mxu0 %v651
      %1902 = vmatpush1.msra.mxu0 %v650
      %1903 = vmatprep.subr.mxu0 %v653
      %1904 = vmatpush1.msra.mxu0 %v652
      %1905 = vmatprep.subr.mxu0 %v655
      %1906 = vmatpush1.msra.mxu0 %v654
      %1907 = vmatprep.subr.mxu0 %v657
      %1908 = vmatpush1.msra.mxu0 %v656
      %1909 = vmatprep.subr.mxu0 %v659
      %1910 = vmatpush1.msra.mxu0 %v658
      %1911 = vmatprep.subr.mxu0 %v661
      %1912 = vmatpush1.msra.mxu0 %v660
      %1913 = vmatprep.subr.mxu0 %v663
      %1914 = vmatpush1.msra.mxu0 %v662
      %1915 = vmatprep.subr.mxu0 %v665
      %1916 = vmatpush1.msra.mxu0 %v664
      %1917 = vmatprep.subr.mxu0 %v667
      %1918 = vmatpush1.msra.mxu0 %v666
      %1919 = vmatprep.subr.mxu0 %v669
      %1920 = vmatpush1.msra.mxu0 %v668
      %1921 = vmatprep.subr.mxu0 %v671
      %1922 = vmatpush1.msra.mxu0 %v670
      %1923 = vmatprep.subr.mxu0 %v673
      %1924 = vmatpush1.msra.mxu0 %v672
      %1925 = vmatprep.subr.mxu0 %v675
      %1926 = vmatpush1.msra.mxu0 %v674
      %1927 = vmatprep.subr.mxu0 %v677
      %1928 = vmatpush1.msra.mxu0 %v676
      %1929 = vmatprep.subr.mxu0 %v679
      %1930 = vmatpush1.msra.mxu0 %v678
      %1931 = vmatprep.subr.mxu0 %v681
      %1932 = vmatpush1.msra.mxu0 %v680
      %1933 = vmatprep.subr.mxu0 %v683
      %1934 = vmatpush1.msra.mxu0 %v682
      %1935 = vmatprep.subr.mxu0 %v685
      %1936 = vmatpush1.msra.mxu0 %v684
      %1937 = vmatprep.subr.mxu0 %v687
      %1938 = vmatpush1.msra.mxu0 %v686
      %1939 = vmatprep.subr.mxu0 %v689
      %1940 = vmatpush1.msra.mxu0 %v688
      %1941 = vmatprep.subr.mxu0 %v691
      %1942 = vmatpush1.msra.mxu0 %v690
      %1943 = vmatprep.subr.mxu0 %v693
      %1944 = vmatpush1.msra.mxu0 %v692
      %1945 = vmatprep.subr.mxu0 %v695
      %1946 = vmatpush1.msra.mxu0 %v694
      %1947 = vmatprep.subr.mxu0 %v697
      %1948 = vmatpush1.msra.mxu0 %v696
      %1949 = vmatprep.subr.mxu0 %v699
      %1950 = vmatpush1.msra.mxu0 %v698
      %1951 = vmatprep.subr.mxu0 %v701
      %1952 = vmatpush1.msra.mxu0 %v700
      %1953 = vmatprep.subr.mxu0 %v703
      %1954 = vmatpush1.msra.mxu0 %v702
      %1955 = vmatprep.subr.mxu0 %v705
      %1956 = vmatpush1.msra.mxu0 %v704
      %1957 = vmatprep.subr.mxu0 %v707
      %1958 = vmatpush1.msra.mxu0 %v706
      %1959 = vmatprep.mubr.f32.mxu0 %v1853
      %1960 = vmatmul.mubr.f32.gmra.mrb[0].mxu0 %v1852
      %v1961 = vpop.f32.mrb[0].mxu0
      %v1962 = vadd.f32 %v1888, %v1961
      %v1963 = vpop.f32.mrb[0].mxu0
      %v1964 = vadd.f32 %v1892, %v1963
      %1965 = vmatprep.mubr.f32.mxu0 %v1855
      %1966 = vmatmul.mubr.f32.gmra.mrb[0].mxu0 %v1854
      %v1967 = vpop.f32.mrb[0].mxu0
      %v1968 = vadd.f32 %v1888, %v1967
      %v1969 = vpop.f32.mrb[0].mxu0
      %v1970 = vadd.f32 %v1892, %v1969
      %1971 = vmatprep.mubr.f32.mxu0 %v1857
      %1972 = vmatmul.mubr.f32.gmra.mrb[0].mxu0 %v1856
      %v1973 = vpop.f32.mrb[0].mxu0
      %v1974 = vadd.f32 %v1888, %v1973
      %v1975 = vpop.f32.mrb[0].mxu0
      %v1976 = vadd.f32 %v1892, %v1975
      %1977 = vmatprep.mubr.f32.mxu0 %v1859
      %1978 = vmatmul.mubr.f32.gmra.mrb[0].mxu0 %v1858
      %v1979 = vpop.f32.mrb[0].mxu0
      %v1980 = vadd.f32 %v1888, %v1979
      %v1981 = vpop.f32.mrb[0].mxu0
      %v1982 = vadd.f32 %v1892, %v1981
      %1983 = vmatprep.mubr.f32.mxu0 %v1861
      %1984 = vmatmul.mubr.f32.gmra.mrb[0].mxu0 %v1860
      %v1985 = vpop.f32.mrb[0].mxu0
      %v1986 = vadd.f32 %v1888, %v1985
      %v1987 = vpop.f32.mrb[0].mxu0
      %v1988 = vadd.f32 %v1892, %v1987
      %1989 = vmatprep.mubr.f32.mxu0 %v1863
      %1990 = vmatmul.mubr.f32.gmra.mrb[0].mxu0 %v1862
      %v1991 = vpop.f32.mrb[0].mxu0
      %v1992 = vadd.f32 %v1888, %v1991
      %v1993 = vpop.f32.mrb[0].mxu0
      %v1994 = vadd.f32 %v1892, %v1993
      %1995 = vmatprep.mubr.f32.mxu0 %v1865
      %1996 = vmatmul.mubr.f32.gmra.mrb[0].mxu0 %v1864
      %v1997 = vpop.f32.mrb[0].mxu0
      %v1998 = vadd.f32 %v1888, %v1997
      %v1999 = vpop.f32.mrb[0].mxu0
      %v2000 = vadd.f32 %v1892, %v1999
      %2001 = vmatprep.mubr.f32.mxu0 %v1867
      %2002 = vmatmul.mubr.f32.gmra.mrb[0].mxu0 %v1866
      %v2003 = vpop.f32.mrb[0].mxu0
      %v2004 = vadd.f32 %v1888, %v2003
      %v2005 = vpop.f32.mrb[0].mxu0
      %v2006 = vadd.f32 %v1892, %v2005
      %2007 = vmatprep.mubr.f32.mxu0 %v1869
      %2008 = vmatmul.mubr.f32.gmra.mrb[0].mxu0 %v1868
      %v2009 = vpop.f32.mrb[0].mxu0
      %v2010 = vadd.f32 %v1888, %v2009
      %v2011 = vpop.f32.mrb[0].mxu0
      %v2012 = vadd.f32 %v1892, %v2011
      %2013 = vmatprep.mubr.f32.mxu0 %v1871
      %2014 = vmatmul.mubr.f32.gmra.mrb[0].mxu0 %v1870
      %v2015 = vpop.f32.mrb[0].mxu0
      %v2016 = vadd.f32 %v1888, %v2015
      %v2017 = vpop.f32.mrb[0].mxu0
      %v2018 = vadd.f32 %v1892, %v2017
      %2019 = vmatprep.mubr.f32.mxu0 %v1873
      %2020 = vmatmul.mubr.f32.gmra.mrb[0].mxu0 %v1872
      %v2021 = vpop.f32.mrb[0].mxu0
      %v2022 = vadd.f32 %v1888, %v2021
      %v2023 = vpop.f32.mrb[0].mxu0
      %v2024 = vadd.f32 %v1892, %v2023
      %2025 = vmatprep.mubr.f32.mxu0 %v1875
      %2026 = vmatmul.mubr.f32.gmra.mrb[0].mxu0 %v1874
      %v2027 = vpop.f32.mrb[0].mxu0
      %v2028 = vadd.f32 %v1888, %v2027
      %v2029 = vpop.f32.mrb[0].mxu0
      %v2030 = vadd.f32 %v1892, %v2029
      %2031 = vmatprep.mubr.f32.mxu0 %v1877
      %2032 = vmatmul.mubr.f32.gmra.mrb[0].mxu0 %v1876
      %v2033 = vpop.f32.mrb[0].mxu0
      %v2034 = vadd.f32 %v1888, %v2033
      %v2035 = vpop.f32.mrb[0].mxu0
      %v2036 = vadd.f32 %v1892, %v2035
      %2037 = vmatprep.mubr.f32.mxu0 %v1879
      %2038 = vmatmul.mubr.f32.gmra.mrb[0].mxu0 %v1878
      %v2039 = vpop.f32.mrb[0].mxu0
      %v2040 = vadd.f32 %v1888, %v2039
      %v2041 = vpop.f32.mrb[0].mxu0
      %v2042 = vadd.f32 %v1892, %v2041
      %2043 = vmatprep.mubr.f32.mxu0 %v1881
      %2044 = vmatmul.mubr.f32.gmra.mrb[0].mxu0 %v1880
      %v2045 = vpop.f32.mrb[0].mxu0
      %v2046 = vadd.f32 %v1888, %v2045
      %v2047 = vpop.f32.mrb[0].mxu0
      %v2048 = vadd.f32 %v1892, %v2047
      %2049 = vmatprep.mubr.f32.mxu0 %v1883
      %2050 = vmatmul.mubr.f32.gmra.mrb[0].mxu0 %v1882
      %v2051 = vpop.f32.mrb[0].mxu0
      %v2052 = vadd.f32 %v1888, %v2051
      %v2053 = vpop.f32.mrb[0].mxu0
      %v2054 = vadd.f32 %v1892, %v2053
      %2055 = vdwg.mxu0
      %v2056 = vmax.f32 %v1962, 0.0
      %v2057 = vmax.f32 %v1964, 0.0
      %v2058 = vmax.f32 %v1968, 0.0
      %v2059 = vmax.f32 %v1970, 0.0
      %v2060 = vmax.f32 %v1974, 0.0
      %v2061 = vmax.f32 %v1976, 0.0
      %v2062 = vmax.f32 %v1980, 0.0
      %v2063 = vmax.f32 %v1982, 0.0
      %v2064 = vmax.f32 %v1986, 0.0
      %v2065 = vmax.f32 %v1988, 0.0
      %v2066 = vmax.f32 %v1992, 0.0
      %v2067 = vmax.f32 %v1994, 0.0
      %v2068 = vmax.f32 %v1998, 0.0
      %v2069 = vmax.f32 %v2000, 0.0
      %v2070 = vmax.f32 %v2004, 0.0
      %v2071 = vmax.f32 %v2006, 0.0
      %v2072 = vmax.f32 %v2010, 0.0
      %v2073 = vmax.f32 %v2012, 0.0
      %v2074 = vmax.f32 %v2016, 0.0
      %v2075 = vmax.f32 %v2018, 0.0
      %v2076 = vmax.f32 %v2022, 0.0
      %v2077 = vmax.f32 %v2024, 0.0
      %v2078 = vmax.f32 %v2028, 0.0
      %v2079 = vmax.f32 %v2030, 0.0
      %v2080 = vmax.f32 %v2034, 0.0
      %v2081 = vmax.f32 %v2036, 0.0
      %v2082 = vmax.f32 %v2040, 0.0
      %v2083 = vmax.f32 %v2042, 0.0
      %v2084 = vmax.f32 %v2046, 0.0
      %v2085 = vmax.f32 %v2048, 0.0
      %v2086 = vmax.f32 %v2052, 0.0
      %v2087 = vmax.f32 %v2054, 0.0
      %v2089 = vlaneseq
      %v2090 = vshrl.u32 %v2089, 7
      %v2091 = vsub.s32 0, %v2090
      %v2092 = vrot.slane %v745, %v2091
      %2094 = vmatprep.subr.mxu0 0.0
      %2095 = vmatpush1.msra.mxu0 %v708
      %2096 = vmatprep.subr.mxu0 0.0
      %2097 = vmatpush1.msra.mxu0 %v709
      %2098 = vmatprep.subr.mxu0 0.0
      %2099 = vmatpush1.msra.mxu0 %v710
      %2100 = vmatprep.subr.mxu0 0.0
      %2101 = vmatpush1.msra.mxu0 %v711
      %2102 = vmatprep.subr.mxu0 0.0
      %2103 = vmatpush1.msra.mxu0 %v712
      %2104 = vmatprep.subr.mxu0 0.0
      %2105 = vmatpush1.msra.mxu0 %v713
      %2106 = vmatprep.subr.mxu0 0.0
      %2107 = vmatpush1.msra.mxu0 %v714
      %2108 = vmatprep.subr.mxu0 0.0
      %2109 = vmatpush1.msra.mxu0 %v715
      %2110 = vmatprep.subr.mxu0 0.0
      %2111 = vmatpush1.msra.mxu0 %v716
      %2112 = vmatprep.subr.mxu0 0.0
      %2113 = vmatpush1.msra.mxu0 %v717
      %2114 = vmatprep.subr.mxu0 0.0
      %2115 = vmatpush1.msra.mxu0 %v718
      %2116 = vmatprep.subr.mxu0 0.0
      %2117 = vmatpush1.msra.mxu0 %v719
      %2118 = vmatprep.subr.mxu0 0.0
      %2119 = vmatpush1.msra.mxu0 %v720
      %2120 = vmatprep.subr.mxu0 0.0
      %2121 = vmatpush1.msra.mxu0 %v721
      %2122 = vmatprep.subr.mxu0 0.0
      %2123 = vmatpush1.msra.mxu0 %v722
      %2124 = vmatprep.subr.mxu0 0.0
      %2125 = vmatpush1.msra.mxu0 %v723
      %2126 = vmatprep.subr.mxu0 0.0
      %2127 = vmatpush1.msra.mxu0 %v724
      %2128 = vmatprep.subr.mxu0 0.0
      %2129 = vmatpush1.msra.mxu0 %v725
      %2130 = vmatprep.subr.mxu0 0.0
      %2131 = vmatpush1.msra.mxu0 %v726
      %2132 = vmatprep.subr.mxu0 0.0
      %2133 = vmatpush1.msra.mxu0 %v727
      %2134 = vmatprep.subr.mxu0 0.0
      %2135 = vmatpush1.msra.mxu0 %v728
      %2136 = vmatprep.subr.mxu0 0.0
      %2137 = vmatpush1.msra.mxu0 %v729
      %2138 = vmatprep.subr.mxu0 0.0
      %2139 = vmatpush1.msra.mxu0 %v730
      %2140 = vmatprep.subr.mxu0 0.0
      %2141 = vmatpush1.msra.mxu0 %v731
      %2142 = vmatprep.subr.mxu0 0.0
      %2143 = vmatpush1.msra.mxu0 %v732
      %2144 = vmatprep.subr.mxu0 0.0
      %2145 = vmatpush1.msra.mxu0 %v733
      %2146 = vmatprep.subr.mxu0 0.0
      %2147 = vmatpush1.msra.mxu0 %v734
      %2148 = vmatprep.subr.mxu0 0.0
      %2149 = vmatpush1.msra.mxu0 %v735
      %2150 = vmatprep.subr.mxu0 0.0
      %2151 = vmatpush1.msra.mxu0 %v736
      %2152 = vmatprep.subr.mxu0 0.0
      %2153 = vmatpush1.msra.mxu0 %v737
      %2154 = vmatprep.subr.mxu0 0.0
      %2155 = vmatpush1.msra.mxu0 %v738
      %2156 = vmatprep.subr.mxu0 0.0
      %2157 = vmatpush1.msra.mxu0 %v739
      %2158 = vmatprep.mubr.f32.mxu0 %v2057
      %2159 = vmatmul.mubr.f32.gmra.mrb[0].mxu0 %v2056
      %v2160 = vpop.f32.mrb[0].mxu0
      %v2161 = vadd.f32 %v2092, %v2160
      %v2162 = vpop.f32.mrb[0].mxu0
      %2163 = vmatprep.mubr.f32.mxu0 %v2059
      %2164 = vmatmul.mubr.f32.gmra.mrb[0].mxu0 %v2058
      %v2165 = vpop.f32.mrb[0].mxu0
      %v2166 = vadd.f32 %v2092, %v2165
      %v2167 = vpop.f32.mrb[0].mxu0
      %2168 = vmatprep.mubr.f32.mxu0 %v2061
      %2169 = vmatmul.mubr.f32.gmra.mrb[0].mxu0 %v2060
      %v2170 = vpop.f32.mrb[0].mxu0
      %v2171 = vadd.f32 %v2092, %v2170
      %v2172 = vpop.f32.mrb[0].mxu0
      %2173 = vmatprep.mubr.f32.mxu0 %v2063
      %2174 = vmatmul.mubr.f32.gmra.mrb[0].mxu0 %v2062
      %v2175 = vpop.f32.mrb[0].mxu0
      %v2176 = vadd.f32 %v2092, %v2175
      %v2177 = vpop.f32.mrb[0].mxu0
      %2178 = vmatprep.mubr.f32.mxu0 %v2065
      %2179 = vmatmul.mubr.f32.gmra.mrb[0].mxu0 %v2064
      %v2180 = vpop.f32.mrb[0].mxu0
      %v2181 = vadd.f32 %v2092, %v2180
      %v2182 = vpop.f32.mrb[0].mxu0
      %2183 = vmatprep.mubr.f32.mxu0 %v2067
      %2184 = vmatmul.mubr.f32.gmra.mrb[0].mxu0 %v2066
      %v2185 = vpop.f32.mrb[0].mxu0
      %v2186 = vadd.f32 %v2092, %v2185
      %v2187 = vpop.f32.mrb[0].mxu0
      %2188 = vmatprep.mubr.f32.mxu0 %v2069
      %2189 = vmatmul.mubr.f32.gmra.mrb[0].mxu0 %v2068
      %v2190 = vpop.f32.mrb[0].mxu0
      %v2191 = vadd.f32 %v2092, %v2190
      %v2192 = vpop.f32.mrb[0].mxu0
      %2193 = vmatprep.mubr.f32.mxu0 %v2071
      %2194 = vmatmul.mubr.f32.gmra.mrb[0].mxu0 %v2070
      %v2195 = vpop.f32.mrb[0].mxu0
      %v2196 = vadd.f32 %v2092, %v2195
      %v2197 = vpop.f32.mrb[0].mxu0
      %2198 = vmatprep.mubr.f32.mxu0 %v2073
      %2199 = vmatmul.mubr.f32.gmra.mrb[0].mxu0 %v2072
      %v2200 = vpop.f32.mrb[0].mxu0
      %v2201 = vadd.f32 %v2092, %v2200
      %v2202 = vpop.f32.mrb[0].mxu0
      %2203 = vmatprep.mubr.f32.mxu0 %v2075
      %2204 = vmatmul.mubr.f32.gmra.mrb[0].mxu0 %v2074
      %v2205 = vpop.f32.mrb[0].mxu0
      %v2206 = vadd.f32 %v2092, %v2205
      %v2207 = vpop.f32.mrb[0].mxu0
      %2208 = vmatprep.mubr.f32.mxu0 %v2077
      %2209 = vmatmul.mubr.f32.gmra.mrb[0].mxu0 %v2076
      %v2210 = vpop.f32.mrb[0].mxu0
      %v2211 = vadd.f32 %v2092, %v2210
      %v2212 = vpop.f32.mrb[0].mxu0
      %2213 = vmatprep.mubr.f32.mxu0 %v2079
      %2214 = vmatmul.mubr.f32.gmra.mrb[0].mxu0 %v2078
      %v2215 = vpop.f32.mrb[0].mxu0
      %v2216 = vadd.f32 %v2092, %v2215
      %v2217 = vpop.f32.mrb[0].mxu0
      %2218 = vmatprep.mubr.f32.mxu0 %v2081
      %2219 = vmatmul.mubr.f32.gmra.mrb[0].mxu0 %v2080
      %v2220 = vpop.f32.mrb[0].mxu0
      %v2221 = vadd.f32 %v2092, %v2220
      %v2222 = vpop.f32.mrb[0].mxu0
      %2223 = vmatprep.mubr.f32.mxu0 %v2083
      %2224 = vmatmul.mubr.f32.gmra.mrb[0].mxu0 %v2082
      %v2225 = vpop.f32.mrb[0].mxu0
      %v2226 = vadd.f32 %v2092, %v2225
      %v2227 = vpop.f32.mrb[0].mxu0
      %2228 = vmatprep.mubr.f32.mxu0 %v2085
      %2229 = vmatmul.mubr.f32.gmra.mrb[0].mxu0 %v2084
      %v2230 = vpop.f32.mrb[0].mxu0
      %v2231 = vadd.f32 %v2092, %v2230
      %v2232 = vpop.f32.mrb[0].mxu0
      %2233 = vmatprep.mubr.f32.mxu0 %v2087
      %2234 = vmatmul.mubr.f32.gmra.mrb[0].mxu0 %v2086
      %v2235 = vpop.f32.mrb[0].mxu0
      %v2236 = vadd.f32 %v2092, %v2235
      %v2237 = vpop.f32.mrb[0].mxu0
      %2238 = vdwg.mxu0
      %2239 = vst [vmem:[%s442] sm:$0xff] %v2161
      %2240 = vst [vmem:[%s442 + $0x8] sm:$0xff] %v2166
      %2241 = vst [vmem:[%s442 + $0x10] sm:$0xff] %v2171
      %2242 = vst [vmem:[%s442 + $0x18] sm:$0xff] %v2176
      %2243 = vst [vmem:[%s442 + $0x20] sm:$0xff] %v2181
      %2244 = vst [vmem:[%s442 + $0x28] sm:$0xff] %v2186
      %2245 = vst [vmem:[%s442 + $0x30] sm:$0xff] %v2191
      %2246 = vst [vmem:[%s442 + $0x38] sm:$0xff] %v2196
      %2247 = vst [vmem:[%s442 + $0x40] sm:$0xff] %v2201
      %2248 = vst [vmem:[%s442 + $0x48] sm:$0xff] %v2206
      %2249 = vst [vmem:[%s442 + $0x50] sm:$0xff] %v2211
      %2250 = vst [vmem:[%s442 + $0x58] sm:$0xff] %v2216
      %2251 = vst [vmem:[%s442 + $0x60] sm:$0xff] %v2221
      %2252 = vst [vmem:[%s442 + $0x68] sm:$0xff] %v2226
      %2253 = vst [vmem:[%s442 + $0x70] sm:$0xff] %v2231
      %2254 = vst [vmem:[%s442 + $0x78] sm:$0xff] %v2236
      %s2255 = smul.u32 16, %s24
      %p2256 = scmp.lt.s32.totalorder %s2255, 31
      %s2257 = scalar_select %p2256, %s2255, 31
      %s2258 = smul.addr %s2257, 8
      %s2259 = scalar_lea.vmem %s13, %s2258
      // Predicated region
      $region73: #{neural_network_forward.1} parent=71 // pred_check
        %p2260 = pneg %p320
      $region74: #{neural_network_forward.1} parent=71 // pred_check_branch
        %2262 = sbr.rel (%p2260) target = $region76
      $region75: #{neural_network_forward.1} parent=71 // pred_region
        %s2263 = smul.u32 16, %s24
      $region76: #{neural_network_forward.1} parent=71 // pred_fallthru
        _
    $region72: #{neural_network_forward.1} parent=5 // pred_fallthru
      _
    %p2264 = scmp.le.s32.totalorder 2, %s19
    // Predicated region
    $region77: #{neural_network_forward.1} parent=5 // pred_check
      %p2265 = pneg %p2264
    $region78: #{neural_network_forward.1} parent=5 // pred_check_branch
      %2267 = sbr.rel (%p2265) target = $region80
    $region79: #{neural_network_forward.1} parent=5 // pred_region
      %s2268 = ssub.s32 %s19, 2
      // Predicated region
      $region81: #{neural_network_forward.1} parent=79 // pred_check
        %p2269 = pneg %p326
      $region82: #{neural_network_forward.1} parent=79 // pred_check_branch
        %2271 = sbr.rel (%p2269) target = $region84
      $region83: #{neural_network_forward.1} parent=79 // pred_region
        %s2272 = smul.u32 16, %s25
        %p2273 = scmp.lt.s32.totalorder %s2272, 31
        %s2274 = scalar_select %p2273, %s2272, 31
        %s2275 = smul.addr %s2274, 8
        %s2276 = scalar_lea.vmem %s13, %s2275
      $region84: #{neural_network_forward.1} parent=79 // pred_fallthru
        _
    $region80: #{neural_network_forward.1} parent=5 // pred_fallthru
      _
  $region6: #{neural_network_forward.1} parent=0 // loop_footer
    %s23 = sadd.s32 1, %s19
  $region7: #{neural_network_forward.1} parent=0 // loop_footer_branch
    %18 = sbr.rel target = $region3
  $region8: #{neural_network_forward.1} parent=0 // loop_exit
    _

</llo_original>
